<compile_context>
chip_gen: v5e
topology: v5e:2x2
jax: 0.10.0
libtpu: 0.0.40
codegen_flags: <defaults>
</compile_context>

<pallas_src>
import functools
import math

import jax
import jax.numpy as jnp
from jax.experimental import pallas as pl
from jax.experimental.pallas import tpu as pltpu

LN_EPS = 1e-5          # nn.LayerNorm default
NUM_STREAMS = 4


# ----------------------------- in-kernel helpers -----------------------------

def _layernorm(x, gamma, beta):
    # x: (R, C), gamma/beta: (1, C)
    mu = jnp.mean(x, axis=-1, keepdims=True)
    xc = x - mu
    var = jnp.mean(xc * xc, axis=-1, keepdims=True)
    return xc * jax.lax.rsqrt(var + LN_EPS) * gamma + beta


def _gelu_exact(x):
    # matches torch.nn.GELU() (exact erf form)
    return 0.5 * x * (1.0 + jax.lax.erf(x * (1.0 / math.sqrt(2.0))))


# ----------------------------- fused Pallas kernel ----------------------------

def multi_cross_block_kernel(
        x_ref, y_ref,
        g1_ref, b1_ref, g2_ref, b2_ref,
        wq_ref, bq_ref, wkv_ref, bkv_ref, wp_ref, bp_ref,
        g5_ref, b5_ref, w1_ref, b1m_ref, w2_ref, b2m_ref,
        o_ref,
        *, num_heads, scale, approx_recip):
    s = pl.program_id(1)                       # stream index (grid axis 1, 'arbitrary')
    last = pl.num_programs(1) - 1
    Bt, N, C = x_ref.shape
    hd = C // num_heads
    R = Bt * N
    mm_dtype = wq_ref.dtype                    # matmul operand dtype (f32 or bf16)

    # Residual stream lives in the output block across the stream axis.
    @pl.when(s == 0)
    def _():
        o_ref[...] = x_ref[...]

    x2 = o_ref[...].astype(jnp.float32).reshape(R, C)

    # ---- cross-attention sub-block for stream s ----
    xn = _layernorm(x2, g1_ref[0], b1_ref[0])                              # kv source
    yn = _layernorm(y_ref[0].astype(jnp.float32).reshape(R, C),
                    g2_ref[0], b2_ref[0])                                  # q source

    q = jnp.dot(yn.astype(mm_dtype), wq_ref[0],
                preferred_element_type=jnp.float32) + bq_ref[0]
    q = q * scale                                   # scale the (R,C) q, not (Bt,N,N) scores
    kv = jnp.dot(xn.astype(mm_dtype), wkv_ref[0],
                 preferred_element_type=jnp.float32) + bkv_ref[0]          # (R, 2C)

    q3 = q.reshape(Bt, N, C)
    kv3 = kv.reshape(Bt, N, 2 * C)
    wp_i = wp_ref[0]                                # (C, C), loaded once per step

    # Accumulate the output projection per head straight into the residual
    # (no scratch buffer, no sub-128-lane masked stores, no concat).
    xa = x2 + bp_ref[0]
    for h in range(num_heads):                      # static head loop; intermediates
        lo = h * hd                                 # consumed within each iteration
        qh = q3[:, :, lo:lo + hd]
        kh = kv3[:, :, lo:lo + hd]
        vh = kv3[:, :, C + lo:C + lo + hd]
        sc = jax.lax.dot_general(qh.astype(mm_dtype), kh.astype(mm_dtype),
                                 (((2,), (2,)), ((0,), (0,))),
                                 preferred_element_type=jnp.float32)       # (Bt,N,N)
        m = jnp.max(sc, axis=-1, keepdims=True)
        p = jnp.exp(sc - m)
        den = jnp.sum(p, axis=-1, keepdims=True)
        if approx_recip:
            p = p * pl.reciprocal(den, approx=True)        # fast path (EUP)
        else:
            p = p / den                                    # exact parity path
        oh = jax.lax.dot_general(p.astype(mm_dtype), vh.astype(mm_dtype),
                                 (((2,), (1,)), ((0,), (0,))),
                                 preferred_element_type=jnp.float32)       # (Bt,N,hd)
        xa = xa + jnp.dot(oh.reshape(R, hd).astype(mm_dtype), wp_i[lo:lo + hd, :],
                          preferred_element_type=jnp.float32)

    o_ref[...] = xa.reshape(Bt, N, C).astype(o_ref.dtype)

    # ---- MLP sub-block, only on the last stream step ----
    @pl.when(s == last)
    def _():
        xn5 = _layernorm(xa, g5_ref[...], b5_ref[...])
        hmid = jnp.dot(xn5.astype(mm_dtype), w1_ref[...],
                       preferred_element_type=jnp.float32) + b1m_ref[...]
        hmid = _gelu_exact(hmid)
        out = xa + jnp.dot(hmid.astype(mm_dtype), w2_ref[...],
                           preferred_element_type=jnp.float32) + b2m_ref[...]
        o_ref[...] = out.reshape(Bt, N, C).astype(o_ref.dtype)


# ----------------------------- hardware-aware policy ---------------------------

def _vmem_limit_bytes():
    try:
        cap = int(getattr(pltpu.get_tpu_info(), "vmem_capacity_bytes", 0))
    except Exception:
        cap = 0
    if cap <= 0:
        cap = 64 * 1024 * 1024          # conservative fallback (v7x-sized)
    return max(int(cap * 0.8), 32 * 1024 * 1024)


def _tensorcores_per_chip():
    """Best-effort TensorCore count (2 on v7x, 1 on v5e/v6e)."""
    try:
        d = jax.devices()[0]
        n = getattr(d, "num_cores", None)
        if isinstance(n, int) and 1 <= n <= 8:
            return n
        kind = str(getattr(d, "device_kind", "")).lower()
        if "v7" in kind or "7x" in kind:
            return 2
    except Exception:
        pass
    return 1


def _vmem_estimate_bytes(bt, N, C, H, mm_itemsize):
    R = bt * N
    f32 = 4
    io = 3 * 2 * bt * N * C * f32                       # x, y-slice, out (double-buffered)
    attn_w = 2 * (4 * C * C) * mm_itemsize              # ONE stream's wq+wkv+wp, x2 buffers
    mlp_w = (C * H + H * C) * mm_itemsize               # single-buffered (Buffered(1))
    act = (8 * R * C + 2 * R * H + 4 * bt * N * N) * f32
    return io + attn_w + mlp_w + act


def _pick_block_b(B, N, C, H, cores, vmem_budget, mm_itemsize):
    """Largest batch tile that fits VMEM; keep >= `cores` parallel steps on multi-TC chips."""
    if B <= 1:
        return 1
    max_bt = B if cores <= 1 else max(1, B // cores)
    best = 1
    for d in range(1, B + 1):
        if B % d != 0 or d > max_bt:
            continue
        if _vmem_estimate_bytes(d, N, C, H, mm_itemsize) <= vmem_budget:
            best = d
    return best


# ----------------------------- wrapper -----------------------------------------

def multi_cross_block(x, y, attn_params, mlp_params, num_heads,
                      block_b=None, matmul_dtype=jnp.float32):
    assert y.shape[0] == NUM_STREAMS
    B, N, C = x.shape
    assert C % num_heads == 0, "num_heads must divide dim"
    H = mlp_params["w1"].shape[1]
    hd = C // num_heads
    scale = float(hd) ** -0.5

    mm_dtype = jnp.dtype(matmul_dtype)
    approx_recip = (mm_dtype == jnp.bfloat16)   # fast path only; f32 path stays exact
    f32 = jnp.float32

    cores = _tensorcores_per_chip()
    vmem_limit = _vmem_limit_bytes()
    bt = block_b if block_b is not None else _pick_block_b(
        B, N, C, H, cores, int(vmem_limit * 0.75), mm_dtype.itemsize)
    assert B % bt == 0

    def stack(name):
        return jnp.stack([p[name] for p in attn_params], axis=0)

    # Stream-stacked attention parameters (leading dim = stream, indexed by grid axis 1).
    g1 = stack("g1").reshape(NUM_STREAMS, 1, C).astype(f32)
    b1 = stack("b1").reshape(NUM_STREAMS, 1, C).astype(f32)
    g2 = stack("g2").reshape(NUM_STREAMS, 1, C).astype(f32)
    b2 = stack("b2").reshape(NUM_STREAMS, 1, C).astype(f32)
    wq = stack("wq").astype(mm_dtype)                           # (4, C, C)
    bq = stack("bq").reshape(NUM_STREAMS, 1, C).astype(f32)
    wkv = stack("wkv").astype(mm_dtype)                         # (4, C, 2C), kept fused
    bkv = stack("bkv").reshape(NUM_STREAMS, 1, 2 * C).astype(f32)
    wp = stack("wp").astype(mm_dtype)                           # (4, C, C)
    bp = stack("bp").reshape(NUM_STREAMS, 1, C).astype(f32)

    mp = mlp_params
    g5 = mp["g"].reshape(1, C).astype(f32)
    b5 = mp["b"].reshape(1, C).astype(f32)
    w1 = mp["w1"].astype(mm_dtype)
    b1m = mp["b1"].reshape(1, H).astype(f32)
    w2 = mp["w2"].astype(mm_dtype)
    b2m = mp["b2"].reshape(1, C).astype(f32)

    def sspec(shape):
        # Stream-stacked param: only the current stream's block is VMEM-resident.
        nd = len(shape)
        return pl.BlockSpec((1,) + shape, lambda b, s, _n=nd: (s,) + (0,) * _n)

    def cspec(shape):
        # Constant-index (MLP) param: single-buffered to halve its VMEM footprint.
        nd = len(shape)
        idx = lambda b, s, _n=nd: (0,) * _n
        try:
            return pl.BlockSpec(shape, idx, pipeline_mode=pl.Buffered(1))
        except (TypeError, AttributeError):
            return pl.BlockSpec(shape, idx)

    x_spec = pl.BlockSpec((bt, N, C), lambda b, s: (b, 0, 0))
    y_spec = pl.BlockSpec((1, bt, N, C), lambda b, s: (s, b, 0, 0))
    out_spec = pl.BlockSpec((bt, N, C), lambda b, s: (b, 0, 0))   # same block across s

    kernel = functools.partial(multi_cross_block_kernel, num_heads=num_heads,
                               scale=scale, approx_recip=approx_recip)

    return pl.pallas_call(
        kernel,
        out_shape=jax.ShapeDtypeStruct((B, N, C), x.dtype),
        grid=(B // bt, NUM_STREAMS),
        in_specs=[
            x_spec, y_spec,
            sspec((1, C)), sspec((1, C)), sspec((1, C)), sspec((1, C)),
            sspec((C, C)), sspec((1, C)), sspec((C, 2 * C)), sspec((1, 2 * C)),
            sspec((C, C)), sspec((1, C)),
            cspec((1, C)), cspec((1, C)), cspec((C, H)), cspec((1, H)),
            cspec((H, C)), cspec((1, C)),
        ],
        out_specs=out_spec,
        compiler_params=pltpu.CompilerParams(
            dimension_semantics=("parallel", "arbitrary"),
            vmem_limit_bytes=vmem_limit,
        ),
    )(x, y, g1, b1, g2, b2, wq, bq, wkv, bkv, wp, bp,
      g5, b5, w1, b1m, w2, b2m)


# ----------------------------- pure-JAX reference ------------------------------

def _ln_ref(x, g, b):
    mu = jnp.mean(x, axis=-1, keepdims=True)
    var = jnp.mean((x - mu) ** 2, axis=-1, keepdims=True)
    return (x - mu) / jnp.sqrt(var + LN_EPS) * g + b


def ref_multi_cross_block(x, y, attn_params, mlp_params, num_heads):
    B, N, C = x.shape
    hd = C // num_heads
    for i in range(NUM_STREAMS):
        p = attn_params[i]
        xn = _ln_ref(x, p["g1"], p["b1"])
        yn = _ln_ref(y[i], p["g2"], p["b2"])
        q = yn @ p["wq"] + p["bq"]
        kv = xn @ p["wkv"] + p["bkv"]
        k, v = kv[..., :C], kv[..., C:]
        qh = q.reshape(B, N, num_heads, hd).transpose(0, 2, 1, 3)
        kh = k.reshape(B, N, num_heads, hd).transpose(0, 2, 1, 3)
        vh = v.reshape(B, N, num_heads, hd).transpose(0, 2, 1, 3)
        s = jnp.einsum("bhqd,bhkd->bhqk", qh, kh) * (hd ** -0.5)
        a = jax.nn.softmax(s, axis=-1)
        o = jnp.einsum("bhqk,bhkd->bhqd", a, vh).transpose(0, 2, 1, 3).reshape(B, N, C)
        x = x + o @ p["wp"] + p["bp"]
    p = mlp_params
    xn = _ln_ref(x, p["g"], p["b"])
    pre = xn @ p["w1"] + p["b1"]
    h = 0.5 * pre * (1.0 + jax.lax.erf(pre / math.sqrt(2.0)))
    x = x + h @ p["w2"] + p["b2"]
    return x


# ----------------------------- parameter init ----------------------------------

def init_params(key, dim, num_heads, mlp_ratio=4.0):
    hidden = int(dim * mlp_ratio)
    attn_params = []
    for i in range(NUM_STREAMS):
        ks = jax.random.split(jax.random.fold_in(key, i), 6)
        attn_params.append(dict(
            g1=jnp.ones((dim,), jnp.float32), b1=jnp.zeros((dim,), jnp.float32),
            g2=jnp.ones((dim,), jnp.float32), b2=jnp.zeros((dim,), jnp.float32),
            wq=0.02 * jax.random.normal(ks[0], (dim, dim), jnp.float32),
            bq=0.02 * jax.random.normal(ks[1], (dim,), jnp.float32),
            wkv=0.02 * jax.random.normal(ks[2], (dim, 2 * dim), jnp.float32),
            bkv=0.02 * jax.random.normal(ks[3], (2 * dim,), jnp.float32),
            wp=0.02 * jax.random.normal(ks[4], (dim, dim), jnp.float32),
            bp=0.02 * jax.random.normal(ks[5], (dim,), jnp.float32),
        ))
    km = jax.random.split(jax.random.fold_in(key, 100), 4)
    mlp_params = dict(
        g=jnp.ones((dim,), jnp.float32), b=jnp.zeros((dim,), jnp.float32),
        w1=0.02 * jax.random.normal(km[0], (dim, hidden), jnp.float32),
        b1=0.02 * jax.random.normal(km[1], (hidden,), jnp.float32),
        w2=0.02 * jax.random.normal(km[2], (hidden, dim), jnp.float32),
        b2=0.02 * jax.random.normal(km[3], (dim,), jnp.float32),
    )
    return attn_params, mlp_params


# ----------------------------- main ---------------------------------------------

if __name__ == "__main__":
    B, N, C = 2, 8, 32
    num_heads = 4

    key = jax.random.PRNGKey(0)
    kx, ky, kp = jax.random.split(key, 3)
    x = jax.random.normal(kx, (B, N, C), jnp.float32)
    y = jax.random.normal(ky, (NUM_STREAMS, B, N, C), jnp.float32)

    attn_params, mlp_params = init_params(kp, C, num_heads)

    ref = jax.block_until_ready(
        ref_multi_cross_block(x, y, attn_params, mlp_params, num_heads))

    # f32 parity path (exact softmax division).
    out = jax.block_until_ready(
        multi_cross_block(x, y, attn_params, mlp_params, num_heads))
    assert out.shape == (B, N, C)
    assert jnp.allclose(out, ref, atol=2e-3, rtol=2e-3), (
        f"f32 max abs diff {jnp.max(jnp.abs(out - ref))}")

    # bf16 fast path (MXU-native matmuls, f32 accumulation, approx softmax recip).
    out_bf16 = jax.block_until_ready(
        multi_cross_block(x, y, attn_params, mlp_params, num_heads,
                          matmul_dtype=jnp.bfloat16))
    assert jnp.allclose(out_bf16, ref, atol=3e-2, rtol=3e-2), (
        f"bf16 max abs diff {jnp.max(jnp.abs(out_bf16 - ref))}")

    print("KERNEL_OK")
</pallas_src>

<mosaic_0001>
module attributes {stable_mosaic.version = 11 : i64} {
  func.func @multi_cross_block_kernel(%arg0: i32, %arg1: i32, %arg2: memref<2x8x32xf32, #tpu.memory_space<vmem>>, %arg3: memref<1x2x8x32xf32, #tpu.memory_space<vmem>>, %arg4: memref<1x1x32xf32, #tpu.memory_space<vmem>>, %arg5: memref<1x1x32xf32, #tpu.memory_space<vmem>>, %arg6: memref<1x1x32xf32, #tpu.memory_space<vmem>>, %arg7: memref<1x1x32xf32, #tpu.memory_space<vmem>>, %arg8: memref<1x32x32xf32, #tpu.memory_space<vmem>>, %arg9: memref<1x1x32xf32, #tpu.memory_space<vmem>>, %arg10: memref<1x32x64xf32, #tpu.memory_space<vmem>>, %arg11: memref<1x1x64xf32, #tpu.memory_space<vmem>>, %arg12: memref<1x32x32xf32, #tpu.memory_space<vmem>>, %arg13: memref<1x1x32xf32, #tpu.memory_space<vmem>>, %arg14: memref<1x32xf32, #tpu.memory_space<vmem>>, %arg15: memref<1x32xf32, #tpu.memory_space<vmem>>, %arg16: memref<32x128xf32, #tpu.memory_space<vmem>>, %arg17: memref<1x128xf32, #tpu.memory_space<vmem>>, %arg18: memref<128x32xf32, #tpu.memory_space<vmem>>, %arg19: memref<1x32xf32, #tpu.memory_space<vmem>>, %arg20: memref<2x8x32xf32, #tpu.memory_space<vmem>>) attributes {dimension_semantics = [#tpu.dimension_semantics<parallel>, #tpu.dimension_semantics<arbitrary>], iteration_bounds = array<i64: 1, 4>, scalar_prefetch = 0 : i64, scratch_operands = 0 : i64, tpu.core_type = #tpu.core_type<tc>, window_params = [{transform_indices = @transform_0, window_bounds = array<i64: 2, 8, 32>}, {transform_indices = @transform_1, window_bounds = array<i64: 1, 2, 8, 32>}, {transform_indices = @transform_2, window_bounds = array<i64: 1, 1, 32>}, {transform_indices = @transform_3, window_bounds = array<i64: 1, 1, 32>}, {transform_indices = @transform_4, window_bounds = array<i64: 1, 1, 32>}, {transform_indices = @transform_5, window_bounds = array<i64: 1, 1, 32>}, {transform_indices = @transform_6, window_bounds = array<i64: 1, 32, 32>}, {transform_indices = @transform_7, window_bounds = array<i64: 1, 1, 32>}, {transform_indices = @transform_8, window_bounds = array<i64: 1, 32, 64>}, {transform_indices = @transform_9, window_bounds = array<i64: 1, 1, 64>}, {transform_indices = @transform_10, window_bounds = array<i64: 1, 32, 32>}, {transform_indices = @transform_11, window_bounds = array<i64: 1, 1, 32>}, {pipeline_mode = #tpu.pipeline_mode<synchronous>, transform_indices = @transform_12, window_bounds = array<i64: 1, 32>}, {pipeline_mode = #tpu.pipeline_mode<synchronous>, transform_indices = @transform_13, window_bounds = array<i64: 1, 32>}, {pipeline_mode = #tpu.pipeline_mode<synchronous>, transform_indices = @transform_14, window_bounds = array<i64: 32, 128>}, {pipeline_mode = #tpu.pipeline_mode<synchronous>, transform_indices = @transform_15, window_bounds = array<i64: 1, 128>}, {pipeline_mode = #tpu.pipeline_mode<synchronous>, transform_indices = @transform_16, window_bounds = array<i64: 128, 32>}, {pipeline_mode = #tpu.pipeline_mode<synchronous>, transform_indices = @transform_17, window_bounds = array<i64: 1, 32>}, {transform_indices = @transform_18, window_bounds = array<i64: 2, 8, 32>}]} {
    %c0_i32 = arith.constant 0 : i32
    %0 = arith.cmpi eq, %arg1, %c0_i32 : i32
    %1 = arith.extui %0 : i1 to i32
    %c0_i32_0 = arith.constant 0 : i32
    %2 = arith.cmpi ne, %1, %c0_i32_0 : i32
    scf.if %2 {
      %c0_73 = arith.constant 0 : index
      %c0_74 = arith.constant 0 : index
      %c0_75 = arith.constant 0 : index
      %157 = vector.load %arg2[%c0_73, %c0_74, %c0_75] : memref<2x8x32xf32, #tpu.memory_space<vmem>>, vector<2x8x32xf32>
      %c0_76 = arith.constant 0 : index
      %c0_77 = arith.constant 0 : index
      %c0_78 = arith.constant 0 : index
      %158 = vector.load %arg20[%c0_76, %c0_77, %c0_78] : memref<2x8x32xf32, #tpu.memory_space<vmem>>, vector<2x8x32xf32>
      tpu.vector_store %arg20[%c0_76, %c0_77, %c0_78], %157 {strides = array<i32>} : memref<2x8x32xf32, #tpu.memory_space<vmem>>, vector<2x8x32xf32>,
    } else {
    }
    %c0 = arith.constant 0 : index
    %c0_1 = arith.constant 0 : index
    %c0_2 = arith.constant 0 : index
    %3 = vector.load %arg20[%c0, %c0_1, %c0_2] : memref<2x8x32xf32, #tpu.memory_space<vmem>>, vector<2x8x32xf32>
    %4 = vector.shape_cast %3 : vector<2x8x32xf32> to vector<16x32xf32>
    %c0_3 = arith.constant 0 : index
    %c0_4 = arith.constant 0 : index
    %c0_5 = arith.constant 0 : index
    %5 = vector.load %arg4[%c0_3, %c0_4, %c0_5] : memref<1x1x32xf32, #tpu.memory_space<vmem>>, vector<1x1x32xf32>
    %6 = vector.shape_cast %5 : vector<1x1x32xf32> to vector<1x32xf32>
    %c0_6 = arith.constant 0 : index
    %c0_7 = arith.constant 0 : index
    %c0_8 = arith.constant 0 : index
    %7 = vector.load %arg5[%c0_6, %c0_7, %c0_8] : memref<1x1x32xf32, #tpu.memory_space<vmem>>, vector<1x1x32xf32>
    %8 = vector.shape_cast %7 : vector<1x1x32xf32> to vector<1x32xf32>
    %cst = arith.constant dense<0.000000e+00> : vector<16xf32>
    %9 = vector.multi_reduction <add>, %4, %cst [1] : vector<16x32xf32> to vector<16xf32>
    %10 = vector.shape_cast %9 : vector<16xf32> to vector<16x1xf32>
    %cst_9 = arith.constant 3.200000e+01 : f32
    %11 = vector.broadcast %cst_9 : f32 to vector<16x1xf32>
    %12 = arith.divf %10, %11 : vector<16x1xf32>
    %13 = vector.broadcast %12 : vector<16x1xf32> to vector<16x32xf32>
    %14 = arith.subf %4, %13 : vector<16x32xf32>
    %15 = arith.mulf %14, %14 : vector<16x32xf32>
    %cst_10 = arith.constant dense<0.000000e+00> : vector<16xf32>
    %16 = vector.multi_reduction <add>, %15, %cst_10 [1] : vector<16x32xf32> to vector<16xf32>
    %17 = vector.shape_cast %16 : vector<16xf32> to vector<16x1xf32>
    %cst_11 = arith.constant 3.200000e+01 : f32
    %18 = vector.broadcast %cst_11 : f32 to vector<16x1xf32>
    %19 = arith.divf %17, %18 : vector<16x1xf32>
    %cst_12 = arith.constant 9.99999974E-6 : f32
    %20 = vector.broadcast %cst_12 : f32 to vector<16x1xf32>
    %21 = arith.addf %19, %20 : vector<16x1xf32>
    %22 = math.rsqrt %21 : vector<16x1xf32>
    %23 = vector.broadcast %22 : vector<16x1xf32> to vector<16x32xf32>
    %24 = arith.mulf %14, %23 : vector<16x32xf32>
    %25 = vector.broadcast %6 : vector<1x32xf32> to vector<16x32xf32>
    %26 = arith.mulf %24, %25 : vector<16x32xf32>
    %27 = vector.broadcast %8 : vector<1x32xf32> to vector<16x32xf32>
    %28 = arith.addf %26, %27 : vector<16x32xf32>
    %c0_13 = arith.constant 0 : index
    %c0_14 = arith.constant 0 : index
    %c0_15 = arith.constant 0 : index
    %c0_16 = arith.constant 0 : index
    %29 = vector.load %arg3[%c0_13, %c0_14, %c0_15, %c0_16] : memref<1x2x8x32xf32, #tpu.memory_space<vmem>>, vector<1x2x8x32xf32>
    %30 = vector.shape_cast %29 : vector<1x2x8x32xf32> to vector<2x8x32xf32>
    %31 = vector.shape_cast %30 : vector<2x8x32xf32> to vector<16x32xf32>
    %c0_17 = arith.constant 0 : index
    %c0_18 = arith.constant 0 : index
    %c0_19 = arith.constant 0 : index
    %32 = vector.load %arg6[%c0_17, %c0_18, %c0_19] : memref<1x1x32xf32, #tpu.memory_space<vmem>>, vector<1x1x32xf32>
    %33 = vector.shape_cast %32 : vector<1x1x32xf32> to vector<1x32xf32>
    %c0_20 = arith.constant 0 : index
    %c0_21 = arith.constant 0 : index
    %c0_22 = arith.constant 0 : index
    %34 = vector.load %arg7[%c0_20, %c0_21, %c0_22] : memref<1x1x32xf32, #tpu.memory_space<vmem>>, vector<1x1x32xf32>
    %35 = vector.shape_cast %34 : vector<1x1x32xf32> to vector<1x32xf32>
    %cst_23 = arith.constant dense<0.000000e+00> : vector<16xf32>
    %36 = vector.multi_reduction <add>, %31, %cst_23 [1] : vector<16x32xf32> to vector<16xf32>
    %37 = vector.shape_cast %36 : vector<16xf32> to vector<16x1xf32>
    %cst_24 = arith.constant 3.200000e+01 : f32
    %38 = vector.broadcast %cst_24 : f32 to vector<16x1xf32>
    %39 = arith.divf %37, %38 : vector<16x1xf32>
    %40 = vector.broadcast %39 : vector<16x1xf32> to vector<16x32xf32>
    %41 = arith.subf %31, %40 : vector<16x32xf32>
    %42 = arith.mulf %41, %41 : vector<16x32xf32>
    %cst_25 = arith.constant dense<0.000000e+00> : vector<16xf32>
    %43 = vector.multi_reduction <add>, %42, %cst_25 [1] : vector<16x32xf32> to vector<16xf32>
    %44 = vector.shape_cast %43 : vector<16xf32> to vector<16x1xf32>
    %cst_26 = arith.constant 3.200000e+01 : f32
    %45 = vector.broadcast %cst_26 : f32 to vector<16x1xf32>
    %46 = arith.divf %44, %45 : vector<16x1xf32>
    %cst_27 = arith.constant 9.99999974E-6 : f32
    %47 = vector.broadcast %cst_27 : f32 to vector<16x1xf32>
    %48 = arith.addf %46, %47 : vector<16x1xf32>
    %49 = math.rsqrt %48 : vector<16x1xf32>
    %50 = vector.broadcast %49 : vector<16x1xf32> to vector<16x32xf32>
    %51 = arith.mulf %41, %50 : vector<16x32xf32>
    %52 = vector.broadcast %33 : vector<1x32xf32> to vector<16x32xf32>
    %53 = arith.mulf %51, %52 : vector<16x32xf32>
    %54 = vector.broadcast %35 : vector<1x32xf32> to vector<16x32xf32>
    %55 = arith.addf %53, %54 : vector<16x32xf32>
    %c0_28 = arith.constant 0 : index
    %c0_29 = arith.constant 0 : index
    %c0_30 = arith.constant 0 : index
    %56 = vector.load %arg8[%c0_28, %c0_29, %c0_30] : memref<1x32x32xf32, #tpu.memory_space<vmem>>, vector<1x32x32xf32>
    %57 = vector.shape_cast %56 : vector<1x32x32xf32> to vector<32x32xf32>
    %cst_31 = arith.constant dense<0.000000e+00> : vector<16x32xf32>
    %58 = tpu.matmul %55, %57, %cst_31 {dimension_numbers = #tpu.dot_dimension_numbers<[1], [0], [0], [1], [0, 0, 1, 1], [], []>} : vector<16x32xf32>, vector<32x32xf32>, vector<16x32xf32> -> vector<16x32xf32>
    %c0_32 = arith.constant 0 : index
    %c0_33 = arith.constant 0 : index
    %c0_34 = arith.constant 0 : index
    %59 = vector.load %arg9[%c0_32, %c0_33, %c0_34] : memref<1x1x32xf32, #tpu.memory_space<vmem>>, vector<1x1x32xf32>
    %60 = vector.shape_cast %59 : vector<1x1x32xf32> to vector<1x32xf32>
    %61 = vector.broadcast %60 : vector<1x32xf32> to vector<16x32xf32>
    %62 = arith.addf %58, %61 : vector<16x32xf32>
    %cst_35 = arith.constant 0.353553385 : f32
    %63 = vector.broadcast %cst_35 : f32 to vector<16x32xf32>
    %64 = arith.mulf %62, %63 : vector<16x32xf32>
    %c0_36 = arith.constant 0 : index
    %c0_37 = arith.constant 0 : index
    %c0_38 = arith.constant 0 : index
    %65 = vector.load %arg10[%c0_36, %c0_37, %c0_38] : memref<1x32x64xf32, #tpu.memory_space<vmem>>, vector<1x32x64xf32>
    %66 = vector.shape_cast %65 : vector<1x32x64xf32> to vector<32x64xf32>
    %cst_39 = arith.constant dense<0.000000e+00> : vector<16x64xf32>
    %67 = tpu.matmul %28, %66, %cst_39 {dimension_numbers = #tpu.dot_dimension_numbers<[1], [0], [0], [1], [0, 0, 1, 1], [], []>} : vector<16x32xf32>, vector<32x64xf32>, vector<16x64xf32> -> vector<16x64xf32>
    %c0_40 = arith.constant 0 : index
    %c0_41 = arith.constant 0 : index
    %c0_42 = arith.constant 0 : index
    %68 = vector.load %arg11[%c0_40, %c0_41, %c0_42] : memref<1x1x64xf32, #tpu.memory_space<vmem>>, vector<1x1x64xf32>
    %69 = vector.shape_cast %68 : vector<1x1x64xf32> to vector<1x64xf32>
    %70 = vector.broadcast %69 : vector<1x64xf32> to vector<16x64xf32>
    %71 = arith.addf %67, %70 : vector<16x64xf32>
    %72 = vector.shape_cast %64 : vector<16x32xf32> to vector<2x8x32xf32>
    %73 = vector.shape_cast %71 : vector<16x64xf32> to vector<2x8x64xf32>
    %c0_43 = arith.constant 0 : index
    %c0_44 = arith.constant 0 : index
    %c0_45 = arith.constant 0 : index
    %74 = vector.load %arg12[%c0_43, %c0_44, %c0_45] : memref<1x32x32xf32, #tpu.memory_space<vmem>>, vector<1x32x32xf32>
    %75 = vector.shape_cast %74 : vector<1x32x32xf32> to vector<32x32xf32>
    %c0_46 = arith.constant 0 : index
    %c0_47 = arith.constant 0 : index
    %c0_48 = arith.constant 0 : index
    %76 = vector.load %arg13[%c0_46, %c0_47, %c0_48] : memref<1x1x32xf32, #tpu.memory_space<vmem>>, vector<1x1x32xf32>
    %77 = vector.shape_cast %76 : vector<1x1x32xf32> to vector<1x32xf32>
    %78 = vector.broadcast %77 : vector<1x32xf32> to vector<16x32xf32>
    %79 = arith.addf %4, %78 : vector<16x32xf32>
    %80 = vector.extract_strided_slice %72 {offsets = [0, 0, 0], sizes = [2, 8, 8], strides = [1, 1, 1]} : vector<2x8x32xf32> to vector<2x8x8xf32>
    %81 = vector.extract_strided_slice %73 {offsets = [0, 0, 0], sizes = [2, 8, 8], strides = [1, 1, 1]} : vector<2x8x64xf32> to vector<2x8x8xf32>
    %82 = vector.extract_strided_slice %73 {offsets = [0, 0, 32], sizes = [2, 8, 8], strides = [1, 1, 1]} : vector<2x8x64xf32> to vector<2x8x8xf32>
    %cst_49 = arith.constant dense<0.000000e+00> : vector<2x8x8xf32>
    %83 = tpu.matmul %80, %81, %cst_49 {dimension_numbers = #tpu.dot_dimension_numbers<[2], [2], [1], [1], [0, 0, 0, 1, 1, 1], [0], [0]>} : vector<2x8x8xf32>, vector<2x8x8xf32>, vector<2x8x8xf32> -> vector<2x8x8xf32>
    %cst_50 = arith.constant dense<0xFF800000> : vector<2x8xf32>
    %84 = vector.multi_reduction <maximumf>, %83, %cst_50 [2] : vector<2x8x8xf32> to vector<2x8xf32>
    %85 = vector.shape_cast %84 : vector<2x8xf32> to vector<2x8x1xf32>
    %86 = vector.broadcast %85 : vector<2x8x1xf32> to vector<2x8x8xf32>
    %87 = arith.subf %83, %86 : vector<2x8x8xf32>
    %88 = math.exp %87 : vector<2x8x8xf32>
    %cst_51 = arith.constant dense<0.000000e+00> : vector<2x8xf32>
    %89 = vector.multi_reduction <add>, %88, %cst_51 [2] : vector<2x8x8xf32> to vector<2x8xf32>
    %90 = vector.shape_cast %89 : vector<2x8xf32> to vector<2x8x1xf32>
    %91 = vector.broadcast %90 : vector<2x8x1xf32> to vector<2x8x8xf32>
    %92 = arith.divf %88, %91 : vector<2x8x8xf32>
    %cst_52 = arith.constant dense<0.000000e+00> : vector<2x8x8xf32>
    %93 = tpu.matmul %92, %82, %cst_52 {dimension_numbers = #tpu.dot_dimension_numbers<[2], [1], [1], [2], [0, 0, 0, 1, 1, 2], [0], [0]>} : vector<2x8x8xf32>, vector<2x8x8xf32>, vector<2x8x8xf32> -> vector<2x8x8xf32>
    %94 = vector.shape_cast %93 : vector<2x8x8xf32> to vector<16x8xf32>
    %95 = vector.extract_strided_slice %75 {offsets = [0, 0], sizes = [8, 32], strides = [1, 1]} : vector<32x32xf32> to vector<8x32xf32>
    %cst_53 = arith.constant dense<0.000000e+00> : vector<16x32xf32>
    %96 = tpu.matmul %94, %95, %cst_53 {dimension_numbers = #tpu.dot_dimension_numbers<[1], [0], [0], [1], [0, 0, 1, 1], [], []>} : vector<16x8xf32>, vector<8x32xf32>, vector<16x32xf32> -> vector<16x32xf32>
    %97 = arith.addf %79, %96 : vector<16x32xf32>
    %98 = vector.extract_strided_slice %72 {offsets = [0, 0, 8], sizes = [2, 8, 8], strides = [1, 1, 1]} : vector<2x8x32xf32> to vector<2x8x8xf32>
    %99 = vector.extract_strided_slice %73 {offsets = [0, 0, 8], sizes = [2, 8, 8], strides = [1, 1, 1]} : vector<2x8x64xf32> to vector<2x8x8xf32>
    %100 = vector.extract_strided_slice %73 {offsets = [0, 0, 40], sizes = [2, 8, 8], strides = [1, 1, 1]} : vector<2x8x64xf32> to vector<2x8x8xf32>
    %cst_54 = arith.constant dense<0.000000e+00> : vector<2x8x8xf32>
    %101 = tpu.matmul %98, %99, %cst_54 {dimension_numbers = #tpu.dot_dimension_numbers<[2], [2], [1], [1], [0, 0, 0, 1, 1, 1], [0], [0]>} : vector<2x8x8xf32>, vector<2x8x8xf32>, vector<2x8x8xf32> -> vector<2x8x8xf32>
    %cst_55 = arith.constant dense<0xFF800000> : vector<2x8xf32>
    %102 = vector.multi_reduction <maximumf>, %101, %cst_55 [2] : vector<2x8x8xf32> to vector<2x8xf32>
    %103 = vector.shape_cast %102 : vector<2x8xf32> to vector<2x8x1xf32>
    %104 = vector.broadcast %103 : vector<2x8x1xf32> to vector<2x8x8xf32>
    %105 = arith.subf %101, %104 : vector<2x8x8xf32>
    %106 = math.exp %105 : vector<2x8x8xf32>
    %cst_56 = arith.constant dense<0.000000e+00> : vector<2x8xf32>
    %107 = vector.multi_reduction <add>, %106, %cst_56 [2] : vector<2x8x8xf32> to vector<2x8xf32>
    %108 = vector.shape_cast %107 : vector<2x8xf32> to vector<2x8x1xf32>
    %109 = vector.broadcast %108 : vector<2x8x1xf32> to vector<2x8x8xf32>
    %110 = arith.divf %106, %109 : vector<2x8x8xf32>
    %cst_57 = arith.constant dense<0.000000e+00> : vector<2x8x8xf32>
    %111 = tpu.matmul %110, %100, %cst_57 {dimension_numbers = #tpu.dot_dimension_numbers<[2], [1], [1], [2], [0, 0, 0, 1, 1, 2], [0], [0]>} : vector<2x8x8xf32>, vector<2x8x8xf32>, vector<2x8x8xf32> -> vector<2x8x8xf32>
    %112 = vector.shape_cast %111 : vector<2x8x8xf32> to vector<16x8xf32>
    %113 = vector.extract_strided_slice %75 {offsets = [8, 0], sizes = [8, 32], strides = [1, 1]} : vector<32x32xf32> to vector<8x32xf32>
    %cst_58 = arith.constant dense<0.000000e+00> : vector<16x32xf32>
    %114 = tpu.matmul %112, %113, %cst_58 {dimension_numbers = #tpu.dot_dimension_numbers<[1], [0], [0], [1], [0, 0, 1, 1], [], []>} : vector<16x8xf32>, vector<8x32xf32>, vector<16x32xf32> -> vector<16x32xf32>
    %115 = arith.addf %97, %114 : vector<16x32xf32>
    %116 = vector.extract_strided_slice %72 {offsets = [0, 0, 16], sizes = [2, 8, 8], strides = [1, 1, 1]} : vector<2x8x32xf32> to vector<2x8x8xf32>
    %117 = vector.extract_strided_slice %73 {offsets = [0, 0, 16], sizes = [2, 8, 8], strides = [1, 1, 1]} : vector<2x8x64xf32> to vector<2x8x8xf32>
    %118 = vector.extract_strided_slice %73 {offsets = [0, 0, 48], sizes = [2, 8, 8], strides = [1, 1, 1]} : vector<2x8x64xf32> to vector<2x8x8xf32>
    %cst_59 = arith.constant dense<0.000000e+00> : vector<2x8x8xf32>
    %119 = tpu.matmul %116, %117, %cst_59 {dimension_numbers = #tpu.dot_dimension_numbers<[2], [2], [1], [1], [0, 0, 0, 1, 1, 1], [0], [0]>} : vector<2x8x8xf32>, vector<2x8x8xf32>, vector<2x8x8xf32> -> vector<2x8x8xf32>
    %cst_60 = arith.constant dense<0xFF800000> : vector<2x8xf32>
    %120 = vector.multi_reduction <maximumf>, %119, %cst_60 [2] : vector<2x8x8xf32> to vector<2x8xf32>
    %121 = vector.shape_cast %120 : vector<2x8xf32> to vector<2x8x1xf32>
    %122 = vector.broadcast %121 : vector<2x8x1xf32> to vector<2x8x8xf32>
    %123 = arith.subf %119, %122 : vector<2x8x8xf32>
    %124 = math.exp %123 : vector<2x8x8xf32>
    %cst_61 = arith.constant dense<0.000000e+00> : vector<2x8xf32>
    %125 = vector.multi_reduction <add>, %124, %cst_61 [2] : vector<2x8x8xf32> to vector<2x8xf32>
    %126 = vector.shape_cast %125 : vector<2x8xf32> to vector<2x8x1xf32>
    %127 = vector.broadcast %126 : vector<2x8x1xf32> to vector<2x8x8xf32>
    %128 = arith.divf %124, %127 : vector<2x8x8xf32>
    %cst_62 = arith.constant dense<0.000000e+00> : vector<2x8x8xf32>
    %129 = tpu.matmul %128, %118, %cst_62 {dimension_numbers = #tpu.dot_dimension_numbers<[2], [1], [1], [2], [0, 0, 0, 1, 1, 2], [0], [0]>} : vector<2x8x8xf32>, vector<2x8x8xf32>, vector<2x8x8xf32> -> vector<2x8x8xf32>
    %130 = vector.shape_cast %129 : vector<2x8x8xf32> to vector<16x8xf32>
    %131 = vector.extract_strided_slice %75 {offsets = [16, 0], sizes = [8, 32], strides = [1, 1]} : vector<32x32xf32> to vector<8x32xf32>
    %cst_63 = arith.constant dense<0.000000e+00> : vector<16x32xf32>
    %132 = tpu.matmul %130, %131, %cst_63 {dimension_numbers = #tpu.dot_dimension_numbers<[1], [0], [0], [1], [0, 0, 1, 1], [], []>} : vector<16x8xf32>, vector<8x32xf32>, vector<16x32xf32> -> vector<16x32xf32>
    %133 = arith.addf %115, %132 : vector<16x32xf32>
    %134 = vector.extract_strided_slice %72 {offsets = [0, 0, 24], sizes = [2, 8, 8], strides = [1, 1, 1]} : vector<2x8x32xf32> to vector<2x8x8xf32>
    %135 = vector.extract_strided_slice %73 {offsets = [0, 0, 24], sizes = [2, 8, 8], strides = [1, 1, 1]} : vector<2x8x64xf32> to vector<2x8x8xf32>
    %136 = vector.extract_strided_slice %73 {offsets = [0, 0, 56], sizes = [2, 8, 8], strides = [1, 1, 1]} : vector<2x8x64xf32> to vector<2x8x8xf32>
    %cst_64 = arith.constant dense<0.000000e+00> : vector<2x8x8xf32>
    %137 = tpu.matmul %134, %135, %cst_64 {dimension_numbers = #tpu.dot_dimension_numbers<[2], [2], [1], [1], [0, 0, 0, 1, 1, 1], [0], [0]>} : vector<2x8x8xf32>, vector<2x8x8xf32>, vector<2x8x8xf32> -> vector<2x8x8xf32>
    %cst_65 = arith.constant dense<0xFF800000> : vector<2x8xf32>
    %138 = vector.multi_reduction <maximumf>, %137, %cst_65 [2] : vector<2x8x8xf32> to vector<2x8xf32>
    %139 = vector.shape_cast %138 : vector<2x8xf32> to vector<2x8x1xf32>
    %140 = vector.broadcast %139 : vector<2x8x1xf32> to vector<2x8x8xf32>
    %141 = arith.subf %137, %140 : vector<2x8x8xf32>
    %142 = math.exp %141 : vector<2x8x8xf32>
    %cst_66 = arith.constant dense<0.000000e+00> : vector<2x8xf32>
    %143 = vector.multi_reduction <add>, %142, %cst_66 [2] : vector<2x8x8xf32> to vector<2x8xf32>
    %144 = vector.shape_cast %143 : vector<2x8xf32> to vector<2x8x1xf32>
    %145 = vector.broadcast %144 : vector<2x8x1xf32> to vector<2x8x8xf32>
    %146 = arith.divf %142, %145 : vector<2x8x8xf32>
    %cst_67 = arith.constant dense<0.000000e+00> : vector<2x8x8xf32>
    %147 = tpu.matmul %146, %136, %cst_67 {dimension_numbers = #tpu.dot_dimension_numbers<[2], [1], [1], [2], [0, 0, 0, 1, 1, 2], [0], [0]>} : vector<2x8x8xf32>, vector<2x8x8xf32>, vector<2x8x8xf32> -> vector<2x8x8xf32>
    %148 = vector.shape_cast %147 : vector<2x8x8xf32> to vector<16x8xf32>
    %149 = vector.extract_strided_slice %75 {offsets = [24, 0], sizes = [8, 32], strides = [1, 1]} : vector<32x32xf32> to vector<8x32xf32>
    %cst_68 = arith.constant dense<0.000000e+00> : vector<16x32xf32>
    %150 = tpu.matmul %148, %149, %cst_68 {dimension_numbers = #tpu.dot_dimension_numbers<[1], [0], [0], [1], [0, 0, 1, 1], [], []>} : vector<16x8xf32>, vector<8x32xf32>, vector<16x32xf32> -> vector<16x32xf32>
    %151 = arith.addf %133, %150 : vector<16x32xf32>
    %152 = vector.shape_cast %151 : vector<16x32xf32> to vector<2x8x32xf32>
    %c0_69 = arith.constant 0 : index
    %c0_70 = arith.constant 0 : index
    %c0_71 = arith.constant 0 : index
    %153 = vector.load %arg20[%c0_69, %c0_70, %c0_71] : memref<2x8x32xf32, #tpu.memory_space<vmem>>, vector<2x8x32xf32>
    tpu.vector_store %arg20[%c0_69, %c0_70, %c0_71], %152 {strides = array<i32>} : memref<2x8x32xf32, #tpu.memory_space<vmem>>, vector<2x8x32xf32>,
    %c3_i32 = arith.constant 3 : i32
    %154 = arith.cmpi eq, %arg1, %c3_i32 : i32
    %155 = arith.extui %154 : i1 to i32
    %c0_i32_72 = arith.constant 0 : i32
    %156 = arith.cmpi ne, %155, %c0_i32_72 : i32
    scf.if %156 {
      %c0_73 = arith.constant 0 : index
      %c0_74 = arith.constant 0 : index
      %157 = vector.load %arg14[%c0_73, %c0_74] : memref<1x32xf32, #tpu.memory_space<vmem>>, vector<1x32xf32>
      %c0_75 = arith.constant 0 : index
      %c0_76 = arith.constant 0 : index
      %158 = vector.load %arg15[%c0_75, %c0_76] : memref<1x32xf32, #tpu.memory_space<vmem>>, vector<1x32xf32>
      %cst_77 = arith.constant dense<0.000000e+00> : vector<16xf32>
      %159 = vector.multi_reduction <add>, %151, %cst_77 [1] : vector<16x32xf32> to vector<16xf32>
      %160 = vector.shape_cast %159 : vector<16xf32> to vector<16x1xf32>
      %cst_78 = arith.constant 3.200000e+01 : f32
      %161 = vector.broadcast %cst_78 : f32 to vector<16x1xf32>
      %162 = arith.divf %160, %161 : vector<16x1xf32>
      %163 = vector.broadcast %162 : vector<16x1xf32> to vector<16x32xf32>
      %164 = arith.subf %151, %163 : vector<16x32xf32>
      %165 = arith.mulf %164, %164 : vector<16x32xf32>
      %cst_79 = arith.constant dense<0.000000e+00> : vector<16xf32>
      %166 = vector.multi_reduction <add>, %165, %cst_79 [1] : vector<16x32xf32> to vector<16xf32>
      %167 = vector.shape_cast %166 : vector<16xf32> to vector<16x1xf32>
      %cst_80 = arith.constant 3.200000e+01 : f32
      %168 = vector.broadcast %cst_80 : f32 to vector<16x1xf32>
      %169 = arith.divf %167, %168 : vector<16x1xf32>
      %cst_81 = arith.constant 9.99999974E-6 : f32
      %170 = vector.broadcast %cst_81 : f32 to vector<16x1xf32>
      %171 = arith.addf %169, %170 : vector<16x1xf32>
      %172 = math.rsqrt %171 : vector<16x1xf32>
      %173 = vector.broadcast %172 : vector<16x1xf32> to vector<16x32xf32>
      %174 = arith.mulf %164, %173 : vector<16x32xf32>
      %175 = vector.broadcast %157 : vector<1x32xf32> to vector<16x32xf32>
      %176 = arith.mulf %174, %175 : vector<16x32xf32>
      %177 = vector.broadcast %158 : vector<1x32xf32> to vector<16x32xf32>
      %178 = arith.addf %176, %177 : vector<16x32xf32>
      %c0_82 = arith.constant 0 : index
      %c0_83 = arith.constant 0 : index
      %179 = vector.load %arg16[%c0_82, %c0_83] : memref<32x128xf32, #tpu.memory_space<vmem>>, vector<32x128xf32>
      %cst_84 = arith.constant dense<0.000000e+00> : vector<16x128xf32>
      %180 = tpu.matmul %178, %179, %cst_84 {dimension_numbers = #tpu.dot_dimension_numbers<[1], [0], [0], [1], [0, 0, 1, 1], [], []>} : vector<16x32xf32>, vector<32x128xf32>, vector<16x128xf32> -> vector<16x128xf32>
      %c0_85 = arith.constant 0 : index
      %c0_86 = arith.constant 0 : index
      %181 = vector.load %arg17[%c0_85, %c0_86] : memref<1x128xf32, #tpu.memory_space<vmem>>, vector<1x128xf32>
      %182 = vector.broadcast %181 : vector<1x128xf32> to vector<16x128xf32>
      %183 = arith.addf %180, %182 : vector<16x128xf32>
      %cst_87 = arith.constant 5.000000e-01 : f32
      %184 = vector.broadcast %cst_87 : f32 to vector<16x128xf32>
      %185 = arith.mulf %184, %183 : vector<16x128xf32>
      %cst_88 = arith.constant 0.707106769 : f32
      %186 = vector.broadcast %cst_88 : f32 to vector<16x128xf32>
      %187 = arith.mulf %183, %186 : vector<16x128xf32>
      %188 = math.erf %187 : vector<16x128xf32>
      %cst_89 = arith.constant 1.000000e+00 : f32
      %189 = vector.broadcast %cst_89 : f32 to vector<16x128xf32>
      %190 = arith.addf %189, %188 : vector<16x128xf32>
      %191 = arith.mulf %185, %190 : vector<16x128xf32>
      %c0_90 = arith.constant 0 : index
      %c0_91 = arith.constant 0 : index
      %192 = vector.load %arg18[%c0_90, %c0_91] : memref<128x32xf32, #tpu.memory_space<vmem>>, vector<128x32xf32>
      %cst_92 = arith.constant dense<0.000000e+00> : vector<16x32xf32>
      %193 = tpu.matmul %191, %192, %cst_92 {dimension_numbers = #tpu.dot_dimension_numbers<[1], [0], [0], [1], [0, 0, 1, 1], [], []>} : vector<16x128xf32>, vector<128x32xf32>, vector<16x32xf32> -> vector<16x32xf32>
      %194 = arith.addf %151, %193 : vector<16x32xf32>
      %c0_93 = arith.constant 0 : index
      %c0_94 = arith.constant 0 : index
      %195 = vector.load %arg19[%c0_93, %c0_94] : memref<1x32xf32, #tpu.memory_space<vmem>>, vector<1x32xf32>
      %196 = vector.broadcast %195 : vector<1x32xf32> to vector<16x32xf32>
      %197 = arith.addf %194, %196 : vector<16x32xf32>
      %198 = vector.shape_cast %197 : vector<16x32xf32> to vector<2x8x32xf32>
      %c0_95 = arith.constant 0 : index
      %c0_96 = arith.constant 0 : index
      %c0_97 = arith.constant 0 : index
      %199 = vector.load %arg20[%c0_95, %c0_96, %c0_97] : memref<2x8x32xf32, #tpu.memory_space<vmem>>, vector<2x8x32xf32>
      tpu.vector_store %arg20[%c0_95, %c0_96, %c0_97], %198 {strides = array<i32>} : memref<2x8x32xf32, #tpu.memory_space<vmem>>, vector<2x8x32xf32>,
    } else {
    }
    return
  }
  func.func @transform_0(%arg0: i32, %arg1: i32) -> (i32, i32, i32) {
    %c0_i32 = arith.constant 0 : i32
    %c0_i32_0 = arith.constant 0 : i32
    %c0_i32_1 = arith.constant 0 : i32
    return %arg0, %c0_i32, %c0_i32_0 : i32, i32, i32
  }
  func.func @transform_1(%arg0: i32, %arg1: i32) -> (i32, i32, i32, i32) {
    %c0_i32 = arith.constant 0 : i32
    %c0_i32_0 = arith.constant 0 : i32
    %c0_i32_1 = arith.constant 0 : i32
    return %arg1, %arg0, %c0_i32, %c0_i32_0 : i32, i32, i32, i32
  }
  func.func @transform_2(%arg0: i32, %arg1: i32) -> (i32, i32, i32) {
    %c0_i32 = arith.constant 0 : i32
    %c0_i32_0 = arith.constant 0 : i32
    %c0_i32_1 = arith.constant 0 : i32
    return %arg1, %c0_i32, %c0_i32_0 : i32, i32, i32
  }
  func.func @transform_3(%arg0: i32, %arg1: i32) -> (i32, i32, i32) {
    %c0_i32 = arith.constant 0 : i32
    %c0_i32_0 = arith.constant 0 : i32
    %c0_i32_1 = arith.constant 0 : i32
    return %arg1, %c0_i32, %c0_i32_0 : i32, i32, i32
  }
  func.func @transform_4(%arg0: i32, %arg1: i32) -> (i32, i32, i32) {
    %c0_i32 = arith.constant 0 : i32
    %c0_i32_0 = arith.constant 0 : i32
    %c0_i32_1 = arith.constant 0 : i32
    return %arg1, %c0_i32, %c0_i32_0 : i32, i32, i32
  }
  func.func @transform_5(%arg0: i32, %arg1: i32) -> (i32, i32, i32) {
    %c0_i32 = arith.constant 0 : i32
    %c0_i32_0 = arith.constant 0 : i32
    %c0_i32_1 = arith.constant 0 : i32
    return %arg1, %c0_i32, %c0_i32_0 : i32, i32, i32
  }
  func.func @transform_6(%arg0: i32, %arg1: i32) -> (i32, i32, i32) {
    %c0_i32 = arith.constant 0 : i32
    %c0_i32_0 = arith.constant 0 : i32
    %c0_i32_1 = arith.constant 0 : i32
    return %arg1, %c0_i32, %c0_i32_0 : i32, i32, i32
  }
  func.func @transform_7(%arg0: i32, %arg1: i32) -> (i32, i32, i32) {
    %c0_i32 = arith.constant 0 : i32
    %c0_i32_0 = arith.constant 0 : i32
    %c0_i32_1 = arith.constant 0 : i32
    return %arg1, %c0_i32, %c0_i32_0 : i32, i32, i32
  }
  func.func @transform_8(%arg0: i32, %arg1: i32) -> (i32, i32, i32) {
    %c0_i32 = arith.constant 0 : i32
    %c0_i32_0 = arith.constant 0 : i32
    %c0_i32_1 = arith.constant 0 : i32
    return %arg1, %c0_i32, %c0_i32_0 : i32, i32, i32
  }
  func.func @transform_9(%arg0: i32, %arg1: i32) -> (i32, i32, i32) {
    %c0_i32 = arith.constant 0 : i32
    %c0_i32_0 = arith.constant 0 : i32
    %c0_i32_1 = arith.constant 0 : i32
    return %arg1, %c0_i32, %c0_i32_0 : i32, i32, i32
  }
  func.func @transform_10(%arg0: i32, %arg1: i32) -> (i32, i32, i32) {
    %c0_i32 = arith.constant 0 : i32
    %c0_i32_0 = arith.constant 0 : i32
    %c0_i32_1 = arith.constant 0 : i32
    return %arg1, %c0_i32, %c0_i32_0 : i32, i32, i32
  }
  func.func @transform_11(%arg0: i32, %arg1: i32) -> (i32, i32, i32) {
    %c0_i32 = arith.constant 0 : i32
    %c0_i32_0 = arith.constant 0 : i32
    %c0_i32_1 = arith.constant 0 : i32
    return %arg1, %c0_i32, %c0_i32_0 : i32, i32, i32
  }
  func.func @transform_12(%arg0: i32, %arg1: i32) -> (i32, i32) {
    %c0_i32 = arith.constant 0 : i32
    %c0_i32_0 = arith.constant 0 : i32
    %c0_i32_1 = arith.constant 0 : i32
    return %c0_i32, %c0_i32_0 : i32, i32
  }
  func.func @transform_13(%arg0: i32, %arg1: i32) -> (i32, i32) {
    %c0_i32 = arith.constant 0 : i32
    %c0_i32_0 = arith.constant 0 : i32
    %c0_i32_1 = arith.constant 0 : i32
    return %c0_i32, %c0_i32_0 : i32, i32
  }
  func.func @transform_14(%arg0: i32, %arg1: i32) -> (i32, i32) {
    %c0_i32 = arith.constant 0 : i32
    %c0_i32_0 = arith.constant 0 : i32
    %c0_i32_1 = arith.constant 0 : i32
    return %c0_i32, %c0_i32_0 : i32, i32
  }
  func.func @transform_15(%arg0: i32, %arg1: i32) -> (i32, i32) {
    %c0_i32 = arith.constant 0 : i32
    %c0_i32_0 = arith.constant 0 : i32
    %c0_i32_1 = arith.constant 0 : i32
    return %c0_i32, %c0_i32_0 : i32, i32
  }
  func.func @transform_16(%arg0: i32, %arg1: i32) -> (i32, i32) {
    %c0_i32 = arith.constant 0 : i32
    %c0_i32_0 = arith.constant 0 : i32
    %c0_i32_1 = arith.constant 0 : i32
    return %c0_i32, %c0_i32_0 : i32, i32
  }
  func.func @transform_17(%arg0: i32, %arg1: i32) -> (i32, i32) {
    %c0_i32 = arith.constant 0 : i32
    %c0_i32_0 = arith.constant 0 : i32
    %c0_i32_1 = arith.constant 0 : i32
    return %c0_i32, %c0_i32_0 : i32, i32
  }
  func.func @transform_18(%arg0: i32, %arg1: i32) -> (i32, i32, i32) {
    %c0_i32 = arith.constant 0 : i32
    %c0_i32_0 = arith.constant 0 : i32
    %c0_i32_1 = arith.constant 0 : i32
    return %arg0, %c0_i32, %c0_i32_0 : i32, i32, i32
  }
}

</mosaic_0001>

<llo_original>
// kernel: tpu_custom_call.1
$region0: #{tpu_custom_call.1}
  #allocation0 [shape = 'u32[]', space=smem, size = 0x4, offset = 0x4, fixed_abs, tag = 'smem constant byte address 0x4 - core index']
  #allocation1 [shape = 'u32[72,128]{1,0:T(1,128)}', space=vmem, size = 0x9000, scoped, tag = 'internal scratch']
  %s0 = inlined_call_operand.hbm [shape: f32[2,8,32], index: 0, kind: input, shape index: {}]
  %s1 = inlined_call_operand.hbm [shape: f32[4,2,8,32], index: 1, kind: input, shape index: {}]
  %s2 = inlined_call_operand.vmem [shape: f32[4,1,32], index: 2, kind: input, shape index: {}]
  %s3 = inlined_call_operand.hbm [shape: f32[4,1,32], index: 3, kind: input, shape index: {}]
  %s4 = inlined_call_operand.hbm [shape: f32[4,1,32], index: 4, kind: input, shape index: {}]
  %s5 = inlined_call_operand.hbm [shape: f32[4,1,32], index: 5, kind: input, shape index: {}]
  %s6 = inlined_call_operand.vmem [shape: f32[4,32,32], index: 6, kind: input, shape index: {}]
  %s7 = inlined_call_operand.hbm [shape: f32[4,1,32], index: 7, kind: input, shape index: {}]
  %s8 = inlined_call_operand.hbm [shape: f32[4,32,64], index: 8, kind: input, shape index: {}]
  %s9 = inlined_call_operand.hbm [shape: f32[4,1,64], index: 9, kind: input, shape index: {}]
  %s10 = inlined_call_operand.hbm [shape: f32[4,32,32], index: 10, kind: input, shape index: {}]
  %s11 = inlined_call_operand.vmem [shape: f32[4,1,32], index: 11, kind: input, shape index: {}]
  %s12 = inlined_call_operand.vmem [shape: f32[1,32], index: 12, kind: input, shape index: {}]
  %s13 = inlined_call_operand.vmem [shape: f32[1,32], index: 13, kind: input, shape index: {}]
  %s14 = inlined_call_operand.vmem [shape: f32[32,128], index: 14, kind: input, shape index: {}]
  %s15 = inlined_call_operand.vmem [shape: f32[1,128], index: 15, kind: input, shape index: {}]
  %s16 = inlined_call_operand.vmem [shape: f32[128,32], index: 16, kind: input, shape index: {}]
  %s17 = inlined_call_operand.vmem [shape: f32[1,32], index: 17, kind: input, shape index: {}]
  %s18 = inlined_call_operand.hbm [shape: f32[2,8,32], index: 18, kind: output, shape index: {}]
  %s19 = sld [smem:[#allocation0]]
  $region149: #{tpu_custom_call.1} parent=0
    _
  %s21 = ssub.s32 1, %s19
  %s22 = scalar_select 0, %s21, %s19
  $region1: #{tpu_custom_call.1} parent=0
    #allocation2 [shape = 'u8[8192]{0}', space=vmem, size = 0x2000, scoped, tag = 'input window, operand 0, single buffered']
    #allocation3 [shape = 's32[2]{0}', space=sflag, size = 0x8, scoped, tag = 'scoped memory for tpu_custom_call.1']
    #allocation4 [shape = 's32[2]{0}', space=sflag, size = 0x8, scoped, tag = 'scoped memory for tpu_custom_call.1']
    #allocation5 [shape = 'u8[16384]{0}', space=vmem, size = 0x4000, scoped, tag = 'input window, operand 1']
    #allocation6 [shape = 's32[2]{0}', space=sflag, size = 0x8, scoped, tag = 'scoped memory for tpu_custom_call.1']
    #allocation7 [shape = 'u8[1024]{0}', space=vmem, size = 0x400, scoped, tag = 'input window, operand 3']
    #allocation8 [shape = 'u8[1024]{0}', space=vmem, size = 0x400, scoped, tag = 'input window, operand 4']
    #allocation9 [shape = 's32[2]{0}', space=sflag, size = 0x8, scoped, tag = 'scoped memory for tpu_custom_call.1']
    #allocation10 [shape = 'u8[1024]{0}', space=vmem, size = 0x400, scoped, tag = 'input window, operand 5']
    #allocation11 [shape = 'u8[1024]{0}', space=vmem, size = 0x400, scoped, tag = 'input window, operand 7']
    #allocation12 [shape = 's32[2]{0}', space=sflag, size = 0x8, scoped, tag = 'scoped memory for tpu_custom_call.1']
    #allocation13 [shape = 'u8[32768]{0}', space=vmem, size = 0x8000, scoped, tag = 'input window, operand 8']
    #allocation14 [shape = 'u8[1024]{0}', space=vmem, size = 0x400, scoped, tag = 'input window, operand 9']
    #allocation15 [shape = 's32[2]{0}', space=sflag, size = 0x8, scoped, tag = 'scoped memory for tpu_custom_call.1']
    #allocation16 [shape = 'u8[32768]{0}', space=vmem, size = 0x8000, scoped, tag = 'input window, operand 10']
    #allocation17 [shape = 'u8[8192]{0}', space=vmem, size = 0x2000, scoped, tag = 'output window, operand 0, single buffered']
    %23 = vsyncpa [#allocation3], 0
    %24 = vsyncpa [#allocation6], 0
    %s25 = scalar_lea.sflag [#allocation6], 1
    %26 = vsyncpa %s25, 0
    %27 = vsyncpa [#allocation9], 0
    %s28 = scalar_lea.sflag [#allocation9], 1
    %29 = vsyncpa %s28, 0
    %30 = vsyncpa [#allocation12], 0
    %s31 = scalar_lea.sflag [#allocation12], 1
    %32 = vsyncpa %s31, 0
    %33 = vsyncpa [#allocation15], 0
    %s34 = scalar_lea.sflag [#allocation15], 1
    %35 = vsyncpa %s34, 0
    %36 = vsyncpa [#allocation4], 0
    loop: start=0, step=1, limit=6
    $region2: #{tpu_custom_call.1} parent=1 // loop_pre_header
      _
    $region3: #{tpu_custom_call.1} parent=1 // loop_header
      %s38 = sphi 0, %s42
      %p39 = scmp.ge.s32.totalorder %s38, 6
      %s45 = sphi 0, %s57
      %s46 = sphi 0, %s53
      %s47 = sphi 0, %s45
      %s48 = sphi 0, %s46
      %s49 = sphi 0, %s47
      %s50 = sphi 0, %s48
      %s60 = sphi 0, %s62
      %s63 = sphi 0, %s60
      %s64 = sphi 0, %s63
      %s80 = sphi 0, %s64
      %s88 = sphi 0, %s90
      %s91 = sphi 0, %s88
      %s92 = sphi 0, %s91
      %s108 = sphi 0, %s92
      %s114 = sphi 0, %s116
      %s117 = sphi 0, %s114
      %s118 = sphi 0, %s117
      %s134 = sphi 0, %s118
      %s140 = sphi 0, %s142
      %s143 = sphi 0, %s140
      %s144 = sphi 0, %s143
      %s160 = sphi 0, %s144
      %s166 = sphi 0, %s168
      %s169 = sphi 0, %s166
      %s170 = sphi 0, %s169
      %s186 = sphi 0, %s170
      %s192 = sphi 0, %s194
      %s195 = sphi 0, %s192
      %s196 = sphi 0, %s195
      %s212 = sphi 0, %s196
      %s218 = sphi 0, %s220
      %s221 = sphi 0, %s218
      %s222 = sphi 0, %s221
      %s238 = sphi 0, %s222
      %s244 = sphi 0, %s246
      %s247 = sphi 0, %s244
      %s248 = sphi 0, %s247
      %s264 = sphi 0, %s248
      %s270 = sphi 0, %s272
      %s273 = sphi 0, %s270
      %s274 = sphi 0, %s273
      %s290 = sphi 0, %s274
      %s296 = sphi 0, %s298
      %s299 = sphi 0, %s296
      %s300 = sphi 0, %s299
      %s316 = sphi 0, %s300
      %s322 = sphi 0, %s324
      %s325 = sphi 0, %s322
      %s326 = sphi 0, %s325
      %s342 = sphi 0, %s326
      %s348 = sphi 0, %s350
      %s351 = sphi 0, %s348
      %s352 = sphi 0, %s351
      %s368 = sphi 0, %s352
      %s372 = sphi 0, %s372
      %s374 = sphi 0, %s372
      %s375 = sphi 0, %s374
      %s389 = sphi 0, %s375
      %s393 = sphi 0, %s393
      %s395 = sphi 0, %s393
      %s396 = sphi 0, %s395
      %s410 = sphi 0, %s396
      %s414 = sphi 0, %s414
      %s416 = sphi 0, %s414
      %s417 = sphi 0, %s416
      %s431 = sphi 0, %s417
      %s435 = sphi 0, %s435
      %s437 = sphi 0, %s435
      %s438 = sphi 0, %s437
      %s452 = sphi 0, %s438
      %s456 = sphi 0, %s456
      %s458 = sphi 0, %s456
      %s459 = sphi 0, %s458
      %s473 = sphi 0, %s459
      %s477 = sphi 0, %s477
      %s479 = sphi 0, %s477
      %s480 = sphi 0, %s479
      %s494 = sphi 0, %s480
      %s500 = sphi 0, %s502
      %s503 = sphi 0, %s500
      %s504 = sphi 0, %s503
      %s520 = sphi 0, %s504
    $region4: #{tpu_custom_call.1} parent=1 // loop_header_branch
      %41 = sbr.rel (%p39) target = $region8
    $region5: #{tpu_custom_call.1} parent=1 // loop_body
      %s43 = ssub.s32 %s38, 1
      %s44 = ssub.s32 %s38, 2
      %s51 = sadd.s32 1, %s46
      %p52 = scmp.ge.s32.totalorder %s51, 4
      %s53 = scalar_select %p52, 0, %s51
      %s54 = sadd.s32 1, %s45
      %s55 = scalar_select %p52, %s54, %s45
      %p56 = scmp.ge.s32.totalorder %s55, 1
      %s57 = scalar_select %p56, 0, %s55
      %s58 = ssub.s32 %s45, %s57
      %p59 = scmp.eq.s32.totalorder %s58, 0
      %s61 = sadd.s32 %s60, 1
      %s62 = scalar_select %p59, %s60, %s61
      %p65 = pneg %p59
      %p66 = scmp.eq.s32.totalorder %s38, 3
      %p67 = por %p65, %p66
      %p68 = scmp.ne.s32.totalorder %s60, %s63
      %p69 = scmp.eq.s32.totalorder %s38, 0
      %p70 = por %p68, %p69
      %p71 = scmp.ne.s32.totalorder %s60, %s63
      %p72 = scmp.eq.s32.totalorder %s43, 3
      %p73 = por %p71, %p72
      %p74 = scmp.ne.s32.totalorder %s63, %s64
      %p75 = scmp.eq.s32.totalorder %s43, 0
      %p76 = por %p74, %p75
      %p77 = scmp.ne.s32.totalorder %s63, %s64
      %p78 = scmp.eq.s32.totalorder %s44, 3
      %p79 = por %p77, %p78
      %p81 = scmp.ne.s32.totalorder %s64, %s80
      %p82 = scmp.eq.s32.totalorder %s44, 0
      %p83 = por %p81, %p82
      %s84 = ssub.s32 %s46, %s53
      %s85 = ssub.s32 %s45, %s57
      %s86 = sor.u32 %s84, %s85
      %p87 = scmp.eq.s32.totalorder %s86, 0
      %s89 = sadd.s32 %s88, 1
      %s90 = scalar_select %p87, %s88, %s89
      %p93 = pneg %p87
      %p94 = scmp.eq.s32.totalorder %s38, 3
      %p95 = por %p93, %p94
      %p96 = scmp.ne.s32.totalorder %s88, %s91
      %p97 = scmp.eq.s32.totalorder %s38, 0
      %p98 = por %p96, %p97
      %p99 = scmp.ne.s32.totalorder %s88, %s91
      %p100 = scmp.eq.s32.totalorder %s43, 3
      %p101 = por %p99, %p100
      %p102 = scmp.ne.s32.totalorder %s91, %s92
      %p103 = scmp.eq.s32.totalorder %s43, 0
      %p104 = por %p102, %p103
      %p105 = scmp.ne.s32.totalorder %s91, %s92
      %p106 = scmp.eq.s32.totalorder %s44, 3
      %p107 = por %p105, %p106
      %p109 = scmp.ne.s32.totalorder %s92, %s108
      %p110 = scmp.eq.s32.totalorder %s44, 0
      %p111 = por %p109, %p110
      %s112 = ssub.s32 %s46, %s53
      %p113 = scmp.eq.s32.totalorder %s112, 0
      %s115 = sadd.s32 %s114, 1
      %s116 = scalar_select %p113, %s114, %s115
      %p119 = pneg %p113
      %p120 = scmp.eq.s32.totalorder %s38, 3
      %p121 = por %p119, %p120
      %p122 = scmp.ne.s32.totalorder %s114, %s117
      %p123 = scmp.eq.s32.totalorder %s38, 0
      %p124 = por %p122, %p123
      %p125 = scmp.ne.s32.totalorder %s114, %s117
      %p126 = scmp.eq.s32.totalorder %s43, 3
      %p127 = por %p125, %p126
      %p128 = scmp.ne.s32.totalorder %s117, %s118
      %p129 = scmp.eq.s32.totalorder %s43, 0
      %p130 = por %p128, %p129
      %p131 = scmp.ne.s32.totalorder %s117, %s118
      %p132 = scmp.eq.s32.totalorder %s44, 3
      %p133 = por %p131, %p132
      %p135 = scmp.ne.s32.totalorder %s118, %s134
      %p136 = scmp.eq.s32.totalorder %s44, 0
      %p137 = por %p135, %p136
      %s138 = ssub.s32 %s46, %s53
      %p139 = scmp.eq.s32.totalorder %s138, 0
      %s141 = sadd.s32 %s140, 1
      %s142 = scalar_select %p139, %s140, %s141
      %p145 = pneg %p139
      %p146 = scmp.eq.s32.totalorder %s38, 3
      %p147 = por %p145, %p146
      %p148 = scmp.ne.s32.totalorder %s140, %s143
      %p149 = scmp.eq.s32.totalorder %s38, 0
      %p150 = por %p148, %p149
      %p151 = scmp.ne.s32.totalorder %s140, %s143
      %p152 = scmp.eq.s32.totalorder %s43, 3
      %p153 = por %p151, %p152
      %p154 = scmp.ne.s32.totalorder %s143, %s144
      %p155 = scmp.eq.s32.totalorder %s43, 0
      %p156 = por %p154, %p155
      %p157 = scmp.ne.s32.totalorder %s143, %s144
      %p158 = scmp.eq.s32.totalorder %s44, 3
      %p159 = por %p157, %p158
      %p161 = scmp.ne.s32.totalorder %s144, %s160
      %p162 = scmp.eq.s32.totalorder %s44, 0
      %p163 = por %p161, %p162
      %s164 = ssub.s32 %s46, %s53
      %p165 = scmp.eq.s32.totalorder %s164, 0
      %s167 = sadd.s32 %s166, 1
      %s168 = scalar_select %p165, %s166, %s167
      %p171 = pneg %p165
      %p172 = scmp.eq.s32.totalorder %s38, 3
      %p173 = por %p171, %p172
      %p174 = scmp.ne.s32.totalorder %s166, %s169
      %p175 = scmp.eq.s32.totalorder %s38, 0
      %p176 = por %p174, %p175
      %p177 = scmp.ne.s32.totalorder %s166, %s169
      %p178 = scmp.eq.s32.totalorder %s43, 3
      %p179 = por %p177, %p178
      %p180 = scmp.ne.s32.totalorder %s169, %s170
      %p181 = scmp.eq.s32.totalorder %s43, 0
      %p182 = por %p180, %p181
      %p183 = scmp.ne.s32.totalorder %s169, %s170
      %p184 = scmp.eq.s32.totalorder %s44, 3
      %p185 = por %p183, %p184
      %p187 = scmp.ne.s32.totalorder %s170, %s186
      %p188 = scmp.eq.s32.totalorder %s44, 0
      %p189 = por %p187, %p188
      %s190 = ssub.s32 %s46, %s53
      %p191 = scmp.eq.s32.totalorder %s190, 0
      %s193 = sadd.s32 %s192, 1
      %s194 = scalar_select %p191, %s192, %s193
      %p197 = pneg %p191
      %p198 = scmp.eq.s32.totalorder %s38, 3
      %p199 = por %p197, %p198
      %p200 = scmp.ne.s32.totalorder %s192, %s195
      %p201 = scmp.eq.s32.totalorder %s38, 0
      %p202 = por %p200, %p201
      %p203 = scmp.ne.s32.totalorder %s192, %s195
      %p204 = scmp.eq.s32.totalorder %s43, 3
      %p205 = por %p203, %p204
      %p206 = scmp.ne.s32.totalorder %s195, %s196
      %p207 = scmp.eq.s32.totalorder %s43, 0
      %p208 = por %p206, %p207
      %p209 = scmp.ne.s32.totalorder %s195, %s196
      %p210 = scmp.eq.s32.totalorder %s44, 3
      %p211 = por %p209, %p210
      %p213 = scmp.ne.s32.totalorder %s196, %s212
      %p214 = scmp.eq.s32.totalorder %s44, 0
      %p215 = por %p213, %p214
      %s216 = ssub.s32 %s46, %s53
      %p217 = scmp.eq.s32.totalorder %s216, 0
      %s219 = sadd.s32 %s218, 1
      %s220 = scalar_select %p217, %s218, %s219
      %p223 = pneg %p217
      %p224 = scmp.eq.s32.totalorder %s38, 3
      %p225 = por %p223, %p224
      %p226 = scmp.ne.s32.totalorder %s218, %s221
      %p227 = scmp.eq.s32.totalorder %s38, 0
      %p228 = por %p226, %p227
      %p229 = scmp.ne.s32.totalorder %s218, %s221
      %p230 = scmp.eq.s32.totalorder %s43, 3
      %p231 = por %p229, %p230
      %p232 = scmp.ne.s32.totalorder %s221, %s222
      %p233 = scmp.eq.s32.totalorder %s43, 0
      %p234 = por %p232, %p233
      %p235 = scmp.ne.s32.totalorder %s221, %s222
      %p236 = scmp.eq.s32.totalorder %s44, 3
      %p237 = por %p235, %p236
      %p239 = scmp.ne.s32.totalorder %s222, %s238
      %p240 = scmp.eq.s32.totalorder %s44, 0
      %p241 = por %p239, %p240
      %s242 = ssub.s32 %s46, %s53
      %p243 = scmp.eq.s32.totalorder %s242, 0
      %s245 = sadd.s32 %s244, 1
      %s246 = scalar_select %p243, %s244, %s245
      %p249 = pneg %p243
      %p250 = scmp.eq.s32.totalorder %s38, 3
      %p251 = por %p249, %p250
      %p252 = scmp.ne.s32.totalorder %s244, %s247
      %p253 = scmp.eq.s32.totalorder %s38, 0
      %p254 = por %p252, %p253
      %p255 = scmp.ne.s32.totalorder %s244, %s247
      %p256 = scmp.eq.s32.totalorder %s43, 3
      %p257 = por %p255, %p256
      %p258 = scmp.ne.s32.totalorder %s247, %s248
      %p259 = scmp.eq.s32.totalorder %s43, 0
      %p260 = por %p258, %p259
      %p261 = scmp.ne.s32.totalorder %s247, %s248
      %p262 = scmp.eq.s32.totalorder %s44, 3
      %p263 = por %p261, %p262
      %p265 = scmp.ne.s32.totalorder %s248, %s264
      %p266 = scmp.eq.s32.totalorder %s44, 0
      %p267 = por %p265, %p266
      %s268 = ssub.s32 %s46, %s53
      %p269 = scmp.eq.s32.totalorder %s268, 0
      %s271 = sadd.s32 %s270, 1
      %s272 = scalar_select %p269, %s270, %s271
      %p275 = pneg %p269
      %p276 = scmp.eq.s32.totalorder %s38, 3
      %p277 = por %p275, %p276
      %p278 = scmp.ne.s32.totalorder %s270, %s273
      %p279 = scmp.eq.s32.totalorder %s38, 0
      %p280 = por %p278, %p279
      %p281 = scmp.ne.s32.totalorder %s270, %s273
      %p282 = scmp.eq.s32.totalorder %s43, 3
      %p283 = por %p281, %p282
      %p284 = scmp.ne.s32.totalorder %s273, %s274
      %p285 = scmp.eq.s32.totalorder %s43, 0
      %p286 = por %p284, %p285
      %p287 = scmp.ne.s32.totalorder %s273, %s274
      %p288 = scmp.eq.s32.totalorder %s44, 3
      %p289 = por %p287, %p288
      %p291 = scmp.ne.s32.totalorder %s274, %s290
      %p292 = scmp.eq.s32.totalorder %s44, 0
      %p293 = por %p291, %p292
      %s294 = ssub.s32 %s46, %s53
      %p295 = scmp.eq.s32.totalorder %s294, 0
      %s297 = sadd.s32 %s296, 1
      %s298 = scalar_select %p295, %s296, %s297
      %p301 = pneg %p295
      %p302 = scmp.eq.s32.totalorder %s38, 3
      %p303 = por %p301, %p302
      %p304 = scmp.ne.s32.totalorder %s296, %s299
      %p305 = scmp.eq.s32.totalorder %s38, 0
      %p306 = por %p304, %p305
      %p307 = scmp.ne.s32.totalorder %s296, %s299
      %p308 = scmp.eq.s32.totalorder %s43, 3
      %p309 = por %p307, %p308
      %p310 = scmp.ne.s32.totalorder %s299, %s300
      %p311 = scmp.eq.s32.totalorder %s43, 0
      %p312 = por %p310, %p311
      %p313 = scmp.ne.s32.totalorder %s299, %s300
      %p314 = scmp.eq.s32.totalorder %s44, 3
      %p315 = por %p313, %p314
      %p317 = scmp.ne.s32.totalorder %s300, %s316
      %p318 = scmp.eq.s32.totalorder %s44, 0
      %p319 = por %p317, %p318
      %s320 = ssub.s32 %s46, %s53
      %p321 = scmp.eq.s32.totalorder %s320, 0
      %s323 = sadd.s32 %s322, 1
      %s324 = scalar_select %p321, %s322, %s323
      %p327 = pneg %p321
      %p328 = scmp.eq.s32.totalorder %s38, 3
      %p329 = por %p327, %p328
      %p330 = scmp.ne.s32.totalorder %s322, %s325
      %p331 = scmp.eq.s32.totalorder %s38, 0
      %p332 = por %p330, %p331
      %p333 = scmp.ne.s32.totalorder %s322, %s325
      %p334 = scmp.eq.s32.totalorder %s43, 3
      %p335 = por %p333, %p334
      %p336 = scmp.ne.s32.totalorder %s325, %s326
      %p337 = scmp.eq.s32.totalorder %s43, 0
      %p338 = por %p336, %p337
      %p339 = scmp.ne.s32.totalorder %s325, %s326
      %p340 = scmp.eq.s32.totalorder %s44, 3
      %p341 = por %p339, %p340
      %p343 = scmp.ne.s32.totalorder %s326, %s342
      %p344 = scmp.eq.s32.totalorder %s44, 0
      %p345 = por %p343, %p344
      %s346 = ssub.s32 %s46, %s53
      %p347 = scmp.eq.s32.totalorder %s346, 0
      %s349 = sadd.s32 %s348, 1
      %s350 = scalar_select %p347, %s348, %s349
      %p353 = pneg %p347
      %p354 = scmp.eq.s32.totalorder %s38, 3
      %p355 = por %p353, %p354
      %p356 = scmp.ne.s32.totalorder %s348, %s351
      %p357 = scmp.eq.s32.totalorder %s38, 0
      %p358 = por %p356, %p357
      %p359 = scmp.ne.s32.totalorder %s348, %s351
      %p360 = scmp.eq.s32.totalorder %s43, 3
      %p361 = por %p359, %p360
      %p362 = scmp.ne.s32.totalorder %s351, %s352
      %p363 = scmp.eq.s32.totalorder %s43, 0
      %p364 = por %p362, %p363
      %p365 = scmp.ne.s32.totalorder %s351, %s352
      %p366 = scmp.eq.s32.totalorder %s44, 3
      %p367 = por %p365, %p366
      %p369 = scmp.ne.s32.totalorder %s352, %s368
      %p370 = scmp.eq.s32.totalorder %s44, 0
      %p371 = por %p369, %p370
      %s373 = sadd.s32 %s372, 1
      %p376 = scmp.eq.s32.totalorder %s38, 3
      %p377 = scmp.ne.s32.totalorder %s372, %s374
      %p378 = scmp.eq.s32.totalorder %s38, 0
      %p379 = por %p377, %p378
      %p380 = scmp.ne.s32.totalorder %s372, %s374
      %p381 = scmp.eq.s32.totalorder %s43, 3
      %p382 = por %p380, %p381
      %p383 = scmp.ne.s32.totalorder %s374, %s375
      %p384 = scmp.eq.s32.totalorder %s43, 0
      %p385 = por %p383, %p384
      %p386 = scmp.ne.s32.totalorder %s374, %s375
      %p387 = scmp.eq.s32.totalorder %s44, 3
      %p388 = por %p386, %p387
      %p390 = scmp.ne.s32.totalorder %s375, %s389
      %p391 = scmp.eq.s32.totalorder %s44, 0
      %p392 = por %p390, %p391
      %s394 = sadd.s32 %s393, 1
      %p397 = scmp.eq.s32.totalorder %s38, 3
      %p398 = scmp.ne.s32.totalorder %s393, %s395
      %p399 = scmp.eq.s32.totalorder %s38, 0
      %p400 = por %p398, %p399
      %p401 = scmp.ne.s32.totalorder %s393, %s395
      %p402 = scmp.eq.s32.totalorder %s43, 3
      %p403 = por %p401, %p402
      %p404 = scmp.ne.s32.totalorder %s395, %s396
      %p405 = scmp.eq.s32.totalorder %s43, 0
      %p406 = por %p404, %p405
      %p407 = scmp.ne.s32.totalorder %s395, %s396
      %p408 = scmp.eq.s32.totalorder %s44, 3
      %p409 = por %p407, %p408
      %p411 = scmp.ne.s32.totalorder %s396, %s410
      %p412 = scmp.eq.s32.totalorder %s44, 0
      %p413 = por %p411, %p412
      %s415 = sadd.s32 %s414, 1
      %p418 = scmp.eq.s32.totalorder %s38, 3
      %p419 = scmp.ne.s32.totalorder %s414, %s416
      %p420 = scmp.eq.s32.totalorder %s38, 0
      %p421 = por %p419, %p420
      %p422 = scmp.ne.s32.totalorder %s414, %s416
      %p423 = scmp.eq.s32.totalorder %s43, 3
      %p424 = por %p422, %p423
      %p425 = scmp.ne.s32.totalorder %s416, %s417
      %p426 = scmp.eq.s32.totalorder %s43, 0
      %p427 = por %p425, %p426
      %p428 = scmp.ne.s32.totalorder %s416, %s417
      %p429 = scmp.eq.s32.totalorder %s44, 3
      %p430 = por %p428, %p429
      %p432 = scmp.ne.s32.totalorder %s417, %s431
      %p433 = scmp.eq.s32.totalorder %s44, 0
      %p434 = por %p432, %p433
      %s436 = sadd.s32 %s435, 1
      %p439 = scmp.eq.s32.totalorder %s38, 3
      %p440 = scmp.ne.s32.totalorder %s435, %s437
      %p441 = scmp.eq.s32.totalorder %s38, 0
      %p442 = por %p440, %p441
      %p443 = scmp.ne.s32.totalorder %s435, %s437
      %p444 = scmp.eq.s32.totalorder %s43, 3
      %p445 = por %p443, %p444
      %p446 = scmp.ne.s32.totalorder %s437, %s438
      %p447 = scmp.eq.s32.totalorder %s43, 0
      %p448 = por %p446, %p447
      %p449 = scmp.ne.s32.totalorder %s437, %s438
      %p450 = scmp.eq.s32.totalorder %s44, 3
      %p451 = por %p449, %p450
      %p453 = scmp.ne.s32.totalorder %s438, %s452
      %p454 = scmp.eq.s32.totalorder %s44, 0
      %p455 = por %p453, %p454
      %s457 = sadd.s32 %s456, 1
      %p460 = scmp.eq.s32.totalorder %s38, 3
      %p461 = scmp.ne.s32.totalorder %s456, %s458
      %p462 = scmp.eq.s32.totalorder %s38, 0
      %p463 = por %p461, %p462
      %p464 = scmp.ne.s32.totalorder %s456, %s458
      %p465 = scmp.eq.s32.totalorder %s43, 3
      %p466 = por %p464, %p465
      %p467 = scmp.ne.s32.totalorder %s458, %s459
      %p468 = scmp.eq.s32.totalorder %s43, 0
      %p469 = por %p467, %p468
      %p470 = scmp.ne.s32.totalorder %s458, %s459
      %p471 = scmp.eq.s32.totalorder %s44, 3
      %p472 = por %p470, %p471
      %p474 = scmp.ne.s32.totalorder %s459, %s473
      %p475 = scmp.eq.s32.totalorder %s44, 0
      %p476 = por %p474, %p475
      %s478 = sadd.s32 %s477, 1
      %p481 = scmp.eq.s32.totalorder %s38, 3
      %p482 = scmp.ne.s32.totalorder %s477, %s479
      %p483 = scmp.eq.s32.totalorder %s38, 0
      %p484 = por %p482, %p483
      %p485 = scmp.ne.s32.totalorder %s477, %s479
      %p486 = scmp.eq.s32.totalorder %s43, 3
      %p487 = por %p485, %p486
      %p488 = scmp.ne.s32.totalorder %s479, %s480
      %p489 = scmp.eq.s32.totalorder %s43, 0
      %p490 = por %p488, %p489
      %p491 = scmp.ne.s32.totalorder %s479, %s480
      %p492 = scmp.eq.s32.totalorder %s44, 3
      %p493 = por %p491, %p492
      %p495 = scmp.ne.s32.totalorder %s480, %s494
      %p496 = scmp.eq.s32.totalorder %s44, 0
      %p497 = por %p495, %p496
      %s498 = ssub.s32 %s45, %s57
      %p499 = scmp.eq.s32.totalorder %s498, 0
      %s501 = sadd.s32 %s500, 1
      %s502 = scalar_select %p499, %s500, %s501
      %p505 = pneg %p499
      %p506 = scmp.eq.s32.totalorder %s38, 3
      %p507 = por %p505, %p506
      %p508 = scmp.ne.s32.totalorder %s500, %s503
      %p509 = scmp.eq.s32.totalorder %s38, 0
      %p510 = por %p508, %p509
      %p511 = scmp.ne.s32.totalorder %s500, %s503
      %p512 = scmp.eq.s32.totalorder %s43, 3
      %p513 = por %p511, %p512
      %p514 = scmp.ne.s32.totalorder %s503, %s504
      %p515 = scmp.eq.s32.totalorder %s43, 0
      %p516 = por %p514, %p515
      %p517 = scmp.ne.s32.totalorder %s503, %s504
      %p518 = scmp.eq.s32.totalorder %s44, 3
      %p519 = por %p517, %p518
      %p521 = scmp.ne.s32.totalorder %s504, %s520
      %p522 = scmp.eq.s32.totalorder %s44, 0
      %p523 = por %p521, %p522
      %p524 = scmp.le.s32.totalorder 1, %s38
      %p525 = scmp.lt.s32.totalorder %s38, 5
      %p526 = pnand %p524, %p525
      %p527 = pneg %p526
      // Predicated region
      $region9: #{tpu_custom_call.1} parent=5 // pred_check
        _
      $region10: #{tpu_custom_call.1} parent=5 // pred_check_branch
        %529 = sbr.rel (%p526) target = $region12
      $region11: #{tpu_custom_call.1} parent=5 // pred_region
        %s530 = ssub.s32 %s38, 1
        // Predicated region
        $region13: #{tpu_custom_call.1} parent=11 // pred_check
          %p531 = pneg %p76
        $region14: #{tpu_custom_call.1} parent=11 // pred_check_branch
          %533 = sbr.rel (%p531) target = $region16
        $region15: #{tpu_custom_call.1} parent=11 // pred_region
          %s534 = smul.u32 2, %s47
          %536 = vsyncadd [#allocation3], 0
          %s537 = smul.addr %s534, 8
          %s538 = scalar_lea.hbm %s0, %s537
          %s539 = sshll.u32 %s538, 4
          %s540 = int_to_ptr.hbm [resolvable:$true] %s539
          %s541 = sshll.u32 [#allocation2], 4
          %s542 = int_to_ptr.vmem [resolvable:$true] %s541
          %547 = dma.hbm_to_vmem [thread:$0]  %s540, 256, %s542, [#allocation3], 128, 128, 8
        $region16: #{tpu_custom_call.1} parent=11 // pred_fallthru
          _
        // Predicated region
        $region17: #{tpu_custom_call.1} parent=11 // pred_check
          %p548 = pneg %p385
        $region18: #{tpu_custom_call.1} parent=11 // pred_check_branch
          %550 = sbr.rel (%p548) target = $region20
        $region19: #{tpu_custom_call.1} parent=11 // pred_region
          _
        $region20: #{tpu_custom_call.1} parent=11 // pred_fallthru
          _
        // Predicated region
        $region21: #{tpu_custom_call.1} parent=11 // pred_check
          %p551 = pneg %p406
        $region22: #{tpu_custom_call.1} parent=11 // pred_check_branch
          %553 = sbr.rel (%p551) target = $region24
        $region23: #{tpu_custom_call.1} parent=11 // pred_region
          _
        $region24: #{tpu_custom_call.1} parent=11 // pred_fallthru
          _
        // Predicated region
        $region25: #{tpu_custom_call.1} parent=11 // pred_check
          %p554 = pneg %p427
        $region26: #{tpu_custom_call.1} parent=11 // pred_check_branch
          %556 = sbr.rel (%p554) target = $region28
        $region27: #{tpu_custom_call.1} parent=11 // pred_region
          _
        $region28: #{tpu_custom_call.1} parent=11 // pred_fallthru
          _
        // Predicated region
        $region29: #{tpu_custom_call.1} parent=11 // pred_check
          %p557 = pneg %p448
        $region30: #{tpu_custom_call.1} parent=11 // pred_check_branch
          %559 = sbr.rel (%p557) target = $region32
        $region31: #{tpu_custom_call.1} parent=11 // pred_region
          _
        $region32: #{tpu_custom_call.1} parent=11 // pred_fallthru
          _
        // Predicated region
        $region33: #{tpu_custom_call.1} parent=11 // pred_check
          %p560 = pneg %p469
        $region34: #{tpu_custom_call.1} parent=11 // pred_check_branch
          %562 = sbr.rel (%p560) target = $region36
        $region35: #{tpu_custom_call.1} parent=11 // pred_region
          _
        $region36: #{tpu_custom_call.1} parent=11 // pred_fallthru
          _
        // Predicated region
        $region37: #{tpu_custom_call.1} parent=11 // pred_check
          %p563 = pneg %p490
        $region38: #{tpu_custom_call.1} parent=11 // pred_check_branch
          %565 = sbr.rel (%p563) target = $region40
        $region39: #{tpu_custom_call.1} parent=11 // pred_region
          _
        $region40: #{tpu_custom_call.1} parent=11 // pred_fallthru
          _
      $region12: #{tpu_custom_call.1} parent=5 // pred_fallthru
        _
      %p566 = scmp.lt.s32.totalorder %s38, 4
      // Predicated region
      $region41: #{tpu_custom_call.1} parent=5 // pred_check
        %p567 = pneg %p566
      $region42: #{tpu_custom_call.1} parent=5 // pred_check_branch
        %569 = sbr.rel (%p567) target = $region44
      $region43: #{tpu_custom_call.1} parent=5 // pred_region
        // Predicated region
        $region45: #{tpu_custom_call.1} parent=43 // pred_check
          %p570 = pneg %p98
        $region46: #{tpu_custom_call.1} parent=43 // pred_check_branch
          %572 = sbr.rel (%p570) target = $region48
        $region47: #{tpu_custom_call.1} parent=43 // pred_region
          %s573 = sand.u32 %s38, 1
          %s574 = scalar_lea.sflag [#allocation6], %s573
          %s575 = sand.u32 %s88, 1
          %s576 = smul.addr %s575, 16
          %s577 = scalar_lea.vmem [#allocation5], %s576
          %s578 = smul.u32 2, %s45
          %580 = vsyncadd %s574, 0
          %s581 = smul.addr %s46, 2
          %s582 = sadd.s32 %s578, %s581
          %s583 = smul.addr %s582, 8
          %s584 = scalar_lea.hbm %s1, %s583
          %s585 = sshll.u32 %s584, 4
          %s586 = int_to_ptr.hbm [resolvable:$true] %s585
          %s587 = sshll.u32 %s577, 4
          %s588 = int_to_ptr.vmem [resolvable:$true] %s587
          %593 = dma.hbm_to_vmem [thread:$0]  %s586, 256, %s588, %s574, 128, 128, 8
        $region48: #{tpu_custom_call.1} parent=43 // pred_fallthru
          _
        // Predicated region
        $region49: #{tpu_custom_call.1} parent=43 // pred_check
          %p594 = pneg %p124
        $region50: #{tpu_custom_call.1} parent=43 // pred_check_branch
          %596 = sbr.rel (%p594) target = $region52
        $region51: #{tpu_custom_call.1} parent=43 // pred_region
          %p597 = scmp.lt.s32.totalorder %s46, 3
          %s598 = scalar_select %p597, %s46, 3
          %s599 = scalar_lea.vmem %s2, %s598
        $region52: #{tpu_custom_call.1} parent=43 // pred_fallthru
          _
        // Predicated region
        $region53: #{tpu_custom_call.1} parent=43 // pred_check
          %p600 = pneg %p150
        $region54: #{tpu_custom_call.1} parent=43 // pred_check_branch
          %602 = sbr.rel (%p600) target = $region56
        $region55: #{tpu_custom_call.1} parent=43 // pred_region
          %s603 = sand.u32 %s38, 1
          %s604 = scalar_lea.sflag [#allocation6], %s603
          %s605 = sand.u32 %s140, 1
          %s606 = scalar_lea.vmem [#allocation7], %s605
          %608 = vsyncadd %s604, 0
          %s609 = scalar_lea.hbm %s3, %s46
          %s611 = sshll.u32 %s609, 4
          %s612 = int_to_ptr.hbm [resolvable:$true] %s611
          %s613 = sshll.u32 %s606, 4
          %s614 = int_to_ptr.vmem [resolvable:$true] %s613
          %616 = dma.hbm_to_vmem [thread:$0]  %s612, 16, %s614, %s604
        $region56: #{tpu_custom_call.1} parent=43 // pred_fallthru
          _
        // Predicated region
        $region57: #{tpu_custom_call.1} parent=43 // pred_check
          %p617 = pneg %p176
        $region58: #{tpu_custom_call.1} parent=43 // pred_check_branch
          %619 = sbr.rel (%p617) target = $region60
        $region59: #{tpu_custom_call.1} parent=43 // pred_region
          %s620 = sand.u32 %s38, 1
          %s621 = scalar_lea.sflag [#allocation9], %s620
          %s622 = sand.u32 %s166, 1
          %s623 = scalar_lea.vmem [#allocation8], %s622
          %625 = vsyncadd %s621, 0
          %s626 = scalar_lea.hbm %s4, %s46
          %s628 = sshll.u32 %s626, 4
          %s629 = int_to_ptr.hbm [resolvable:$true] %s628
          %s630 = sshll.u32 %s623, 4
          %s631 = int_to_ptr.vmem [resolvable:$true] %s630
          %633 = dma.hbm_to_vmem [thread:$0]  %s629, 16, %s631, %s621
        $region60: #{tpu_custom_call.1} parent=43 // pred_fallthru
          _
        // Predicated region
        $region61: #{tpu_custom_call.1} parent=43 // pred_check
          %p634 = pneg %p202
        $region62: #{tpu_custom_call.1} parent=43 // pred_check_branch
          %636 = sbr.rel (%p634) target = $region64
        $region63: #{tpu_custom_call.1} parent=43 // pred_region
          %s637 = sand.u32 %s38, 1
          %s638 = scalar_lea.sflag [#allocation9], %s637
          %s639 = sand.u32 %s192, 1
          %s640 = scalar_lea.vmem [#allocation10], %s639
          %642 = vsyncadd %s638, 0
          %s643 = scalar_lea.hbm %s5, %s46
          %s645 = sshll.u32 %s643, 4
          %s646 = int_to_ptr.hbm [resolvable:$true] %s645
          %s647 = sshll.u32 %s640, 4
          %s648 = int_to_ptr.vmem [resolvable:$true] %s647
          %650 = dma.hbm_to_vmem [thread:$0]  %s646, 16, %s648, %s638
        $region64: #{tpu_custom_call.1} parent=43 // pred_fallthru
          _
        // Predicated region
        $region65: #{tpu_custom_call.1} parent=43 // pred_check
          %p651 = pneg %p228
        $region66: #{tpu_custom_call.1} parent=43 // pred_check_branch
          %653 = sbr.rel (%p651) target = $region68
        $region67: #{tpu_custom_call.1} parent=43 // pred_region
          %p654 = scmp.lt.s32.totalorder %s46, 3
          %s655 = scalar_select %p654, %s46, 3
          %s656 = smul.addr %s655, 4
          %s657 = smul.addr %s656, 8
          %s658 = scalar_lea.vmem %s6, %s657
        $region68: #{tpu_custom_call.1} parent=43 // pred_fallthru
          _
        // Predicated region
        $region69: #{tpu_custom_call.1} parent=43 // pred_check
          %p659 = pneg %p254
        $region70: #{tpu_custom_call.1} parent=43 // pred_check_branch
          %661 = sbr.rel (%p659) target = $region72
        $region71: #{tpu_custom_call.1} parent=43 // pred_region
          %s662 = sand.u32 %s38, 1
          %s663 = scalar_lea.sflag [#allocation12], %s662
          %s664 = sand.u32 %s244, 1
          %s665 = scalar_lea.vmem [#allocation11], %s664
          %667 = vsyncadd %s663, 0
          %s668 = scalar_lea.hbm %s7, %s46
          %s670 = sshll.u32 %s668, 4
          %s671 = int_to_ptr.hbm [resolvable:$true] %s670
          %s672 = sshll.u32 %s665, 4
          %s673 = int_to_ptr.vmem [resolvable:$true] %s672
          %675 = dma.hbm_to_vmem [thread:$0]  %s671, 16, %s673, %s663
        $region72: #{tpu_custom_call.1} parent=43 // pred_fallthru
          _
        // Predicated region
        $region73: #{tpu_custom_call.1} parent=43 // pred_check
          %p676 = pneg %p280
        $region74: #{tpu_custom_call.1} parent=43 // pred_check_branch
          %678 = sbr.rel (%p676) target = $region76
        $region75: #{tpu_custom_call.1} parent=43 // pred_region
          %s679 = sand.u32 %s38, 1
          %s680 = scalar_lea.sflag [#allocation12], %s679
          %s681 = sand.u32 %s270, 1
          %s682 = smul.addr %s681, 32
          %s683 = scalar_lea.vmem [#allocation13], %s682
          %685 = vsyncadd %s680, 0
          %s686 = smul.addr %s46, 4
          %s687 = smul.addr %s686, 8
          %s688 = scalar_lea.hbm %s8, %s687
          %s689 = sshll.u32 %s688, 4
          %s690 = int_to_ptr.hbm [resolvable:$true] %s689
          %s691 = sshll.u32 %s683, 4
          %s692 = int_to_ptr.vmem [resolvable:$true] %s691
          %697 = dma.hbm_to_vmem [thread:$0]  %s690, 512, %s692, %s680, 128, 128, 8
        $region76: #{tpu_custom_call.1} parent=43 // pred_fallthru
          _
        // Predicated region
        $region77: #{tpu_custom_call.1} parent=43 // pred_check
          %p698 = pneg %p306
        $region78: #{tpu_custom_call.1} parent=43 // pred_check_branch
          %700 = sbr.rel (%p698) target = $region80
        $region79: #{tpu_custom_call.1} parent=43 // pred_region
          %s701 = sand.u32 %s38, 1
          %s702 = scalar_lea.sflag [#allocation15], %s701
          %s703 = sand.u32 %s296, 1
          %s704 = scalar_lea.vmem [#allocation14], %s703
          %706 = vsyncadd %s702, 0
          %s707 = scalar_lea.hbm %s9, %s46
          %s709 = sshll.u32 %s707, 4
          %s710 = int_to_ptr.hbm [resolvable:$true] %s709
          %s711 = sshll.u32 %s704, 4
          %s712 = int_to_ptr.vmem [resolvable:$true] %s711
          %714 = dma.hbm_to_vmem [thread:$0]  %s710, 16, %s712, %s702
        $region80: #{tpu_custom_call.1} parent=43 // pred_fallthru
          _
        // Predicated region
        $region81: #{tpu_custom_call.1} parent=43 // pred_check
          %p715 = pneg %p332
        $region82: #{tpu_custom_call.1} parent=43 // pred_check_branch
          %717 = sbr.rel (%p715) target = $region84
        $region83: #{tpu_custom_call.1} parent=43 // pred_region
          %s718 = sand.u32 %s38, 1
          %s719 = scalar_lea.sflag [#allocation15], %s718
          %s720 = sand.u32 %s322, 1
          %s721 = smul.addr %s720, 32
          %s722 = scalar_lea.vmem [#allocation16], %s721
          %724 = vsyncadd %s719, 0
          %s725 = smul.addr %s46, 4
          %s726 = smul.addr %s725, 8
          %s727 = scalar_lea.hbm %s10, %s726
          %s728 = sshll.u32 %s727, 4
          %s729 = int_to_ptr.hbm [resolvable:$true] %s728
          %s730 = sshll.u32 %s722, 4
          %s731 = int_to_ptr.vmem [resolvable:$true] %s730
          %736 = dma.hbm_to_vmem [thread:$0]  %s729, 512, %s731, %s719, 128, 128, 8
        $region84: #{tpu_custom_call.1} parent=43 // pred_fallthru
          _
        // Predicated region
        $region85: #{tpu_custom_call.1} parent=43 // pred_check
          %p737 = pneg %p358
        $region86: #{tpu_custom_call.1} parent=43 // pred_check_branch
          %739 = sbr.rel (%p737) target = $region88
        $region87: #{tpu_custom_call.1} parent=43 // pred_region
          %p740 = scmp.lt.s32.totalorder %s46, 3
          %s741 = scalar_select %p740, %s46, 3
          %s742 = scalar_lea.vmem %s11, %s741
        $region88: #{tpu_custom_call.1} parent=43 // pred_fallthru
          _
      $region44: #{tpu_custom_call.1} parent=5 // pred_fallthru
        _
      %p743 = scmp.le.s32.totalorder 1, %s38
      %p744 = scmp.lt.s32.totalorder %s38, 5
      %p745 = pnand %p743, %p744
      %p746 = pneg %p745
      // Predicated region
      $region89: #{tpu_custom_call.1} parent=5 // pred_check
        _
      $region90: #{tpu_custom_call.1} parent=5 // pred_check_branch
        %748 = sbr.rel (%p745) target = $region92
      $region91: #{tpu_custom_call.1} parent=5 // pred_region
        %s749 = ssub.s32 %s38, 1
        // Predicated region
        $region93: #{tpu_custom_call.1} parent=91 // pred_check
          %p750 = pneg %p76
        $region94: #{tpu_custom_call.1} parent=91 // pred_check_branch
          %752 = sbr.rel (%p750) target = $region96
        $region95: #{tpu_custom_call.1} parent=91 // pred_region
          %754 = dma.done [#allocation3], 256
        $region96: #{tpu_custom_call.1} parent=91 // pred_fallthru
          _
        %s755 = sand.u32 %s43, 1
        %s756 = scalar_lea.sflag [#allocation6], %s755
        %s757 = sand.u32 %s91, 1
        %s758 = smul.addr %s757, 16
        %s759 = scalar_lea.vmem [#allocation5], %s758
        // Predicated region
        $region97: #{tpu_custom_call.1} parent=91 // pred_check
          %p760 = pneg %p104
        $region98: #{tpu_custom_call.1} parent=91 // pred_check_branch
          %762 = sbr.rel (%p760) target = $region100
        $region99: #{tpu_custom_call.1} parent=91 // pred_region
          %764 = dma.done %s756, 256
        $region100: #{tpu_custom_call.1} parent=91 // pred_fallthru
          _
        %s765 = sand.u32 %s43, 1
        %s766 = scalar_lea.sflag [#allocation6], %s765
        %s767 = sand.u32 %s143, 1
        %s768 = scalar_lea.vmem [#allocation7], %s767
        // Predicated region
        $region101: #{tpu_custom_call.1} parent=91 // pred_check
          %p769 = pneg %p156
        $region102: #{tpu_custom_call.1} parent=91 // pred_check_branch
          %771 = sbr.rel (%p769) target = $region104
        $region103: #{tpu_custom_call.1} parent=91 // pred_region
          %773 = dma.done %s766, 16
        $region104: #{tpu_custom_call.1} parent=91 // pred_fallthru
          _
        %s774 = sand.u32 %s43, 1
        %s775 = scalar_lea.sflag [#allocation9], %s774
        %s776 = sand.u32 %s169, 1
        %s777 = scalar_lea.vmem [#allocation8], %s776
        // Predicated region
        $region105: #{tpu_custom_call.1} parent=91 // pred_check
          %p778 = pneg %p182
        $region106: #{tpu_custom_call.1} parent=91 // pred_check_branch
          %780 = sbr.rel (%p778) target = $region108
        $region107: #{tpu_custom_call.1} parent=91 // pred_region
          %782 = dma.done %s775, 16
        $region108: #{tpu_custom_call.1} parent=91 // pred_fallthru
          _
        %s783 = sand.u32 %s43, 1
        %s784 = scalar_lea.sflag [#allocation9], %s783
        %s785 = sand.u32 %s195, 1
        %s786 = scalar_lea.vmem [#allocation10], %s785
        // Predicated region
        $region109: #{tpu_custom_call.1} parent=91 // pred_check
          %p787 = pneg %p208
        $region110: #{tpu_custom_call.1} parent=91 // pred_check_branch
          %789 = sbr.rel (%p787) target = $region112
        $region111: #{tpu_custom_call.1} parent=91 // pred_region
          %791 = dma.done %s784, 16
        $region112: #{tpu_custom_call.1} parent=91 // pred_fallthru
          _
        %s792 = sand.u32 %s43, 1
        %s793 = scalar_lea.sflag [#allocation12], %s792
        %s794 = sand.u32 %s247, 1
        %s795 = scalar_lea.vmem [#allocation11], %s794
        // Predicated region
        $region113: #{tpu_custom_call.1} parent=91 // pred_check
          %p796 = pneg %p260
        $region114: #{tpu_custom_call.1} parent=91 // pred_check_branch
          %798 = sbr.rel (%p796) target = $region116
        $region115: #{tpu_custom_call.1} parent=91 // pred_region
          %800 = dma.done %s793, 16
        $region116: #{tpu_custom_call.1} parent=91 // pred_fallthru
          _
        %s801 = sand.u32 %s43, 1
        %s802 = scalar_lea.sflag [#allocation12], %s801
        %s803 = sand.u32 %s273, 1
        %s804 = smul.addr %s803, 32
        %s805 = scalar_lea.vmem [#allocation13], %s804
        // Predicated region
        $region117: #{tpu_custom_call.1} parent=91 // pred_check
          %p806 = pneg %p286
        $region118: #{tpu_custom_call.1} parent=91 // pred_check_branch
          %808 = sbr.rel (%p806) target = $region120
        $region119: #{tpu_custom_call.1} parent=91 // pred_region
          %810 = dma.done %s802, 512
        $region120: #{tpu_custom_call.1} parent=91 // pred_fallthru
          _
        %s811 = sand.u32 %s43, 1
        %s812 = scalar_lea.sflag [#allocation15], %s811
        %s813 = sand.u32 %s299, 1
        %s814 = scalar_lea.vmem [#allocation14], %s813
        // Predicated region
        $region121: #{tpu_custom_call.1} parent=91 // pred_check
          %p815 = pneg %p312
        $region122: #{tpu_custom_call.1} parent=91 // pred_check_branch
          %817 = sbr.rel (%p815) target = $region124
        $region123: #{tpu_custom_call.1} parent=91 // pred_region
          %819 = dma.done %s812, 16
        $region124: #{tpu_custom_call.1} parent=91 // pred_fallthru
          _
        %s820 = sand.u32 %s43, 1
        %s821 = scalar_lea.sflag [#allocation15], %s820
        %s822 = sand.u32 %s325, 1
        %s823 = smul.addr %s822, 32
        %s824 = scalar_lea.vmem [#allocation16], %s823
        // Predicated region
        $region125: #{tpu_custom_call.1} parent=91 // pred_check
          %p825 = pneg %p338
        $region126: #{tpu_custom_call.1} parent=91 // pred_check_branch
          %827 = sbr.rel (%p825) target = $region128
        $region127: #{tpu_custom_call.1} parent=91 // pred_region
          %829 = dma.done %s821, 512
        $region128: #{tpu_custom_call.1} parent=91 // pred_fallthru
          _
        %p830 = pneg %p76
        %p831 = pneg %p73
        %s832 = sand.u32 %s43, 1
        %s833 = scalar_lea.sflag [#allocation6], %s832
        %s834 = sand.u32 %s91, 1
        %s835 = smul.addr %s834, 16
        %s836 = scalar_lea.vmem [#allocation5], %s835
        %p837 = pneg %p104
        %p838 = pneg %p101
        %p839 = scmp.lt.s32.totalorder %s48, 3
        %s840 = scalar_select %p839, %s48, 3
        %s841 = scalar_lea.vmem %s2, %s840
        %p842 = pneg %p130
        %p843 = pneg %p127
        %s844 = sand.u32 %s43, 1
        %s845 = scalar_lea.sflag [#allocation6], %s844
        %s846 = sand.u32 %s143, 1
        %s847 = scalar_lea.vmem [#allocation7], %s846
        %p848 = pneg %p156
        %p849 = pneg %p153
        %s850 = sand.u32 %s43, 1
        %s851 = scalar_lea.sflag [#allocation9], %s850
        %s852 = sand.u32 %s169, 1
        %s853 = scalar_lea.vmem [#allocation8], %s852
        %p854 = pneg %p182
        %p855 = pneg %p179
        %s856 = sand.u32 %s43, 1
        %s857 = scalar_lea.sflag [#allocation9], %s856
        %s858 = sand.u32 %s195, 1
        %s859 = scalar_lea.vmem [#allocation10], %s858
        %p860 = pneg %p208
        %p861 = pneg %p205
        %p862 = scmp.lt.s32.totalorder %s48, 3
        %s863 = scalar_select %p862, %s48, 3
        %s864 = smul.addr %s863, 4
        %s865 = smul.addr %s864, 8
        %s866 = scalar_lea.vmem %s6, %s865
        %p867 = pneg %p234
        %p868 = pneg %p231
        %s869 = sand.u32 %s43, 1
        %s870 = scalar_lea.sflag [#allocation12], %s869
        %s871 = sand.u32 %s247, 1
        %s872 = scalar_lea.vmem [#allocation11], %s871
        %p873 = pneg %p260
        %p874 = pneg %p257
        %s875 = sand.u32 %s43, 1
        %s876 = scalar_lea.sflag [#allocation12], %s875
        %s877 = sand.u32 %s273, 1
        %s878 = smul.addr %s877, 32
        %s879 = scalar_lea.vmem [#allocation13], %s878
        %p880 = pneg %p286
        %p881 = pneg %p283
        %s882 = sand.u32 %s43, 1
        %s883 = scalar_lea.sflag [#allocation15], %s882
        %s884 = sand.u32 %s299, 1
        %s885 = scalar_lea.vmem [#allocation14], %s884
        %p886 = pneg %p312
        %p887 = pneg %p309
        %s888 = sand.u32 %s43, 1
        %s889 = scalar_lea.sflag [#allocation15], %s888
        %s890 = sand.u32 %s325, 1
        %s891 = smul.addr %s890, 32
        %s892 = scalar_lea.vmem [#allocation16], %s891
        %p893 = pneg %p338
        %p894 = pneg %p335
        %p895 = scmp.lt.s32.totalorder %s48, 3
        %s896 = scalar_select %p895, %s48, 3
        %s897 = scalar_lea.vmem %s11, %s896
        %p898 = pneg %p364
        %p899 = pneg %p361
        %p900 = pneg %p385
        %p901 = pneg %p382
        %p902 = pneg %p406
        %p903 = pneg %p403
        %p904 = pneg %p427
        %p905 = pneg %p424
        %p906 = pneg %p448
        %p907 = pneg %p445
        %p908 = pneg %p469
        %p909 = pneg %p466
        %p910 = pneg %p490
        %p911 = pneg %p487
        %p912 = pneg %p516
        %p913 = pneg %p513
        %s914 = smul.u32 2, %s47
        %s915 = smul.u32 2, %s47
        %p916 = scmp.lt.s32.totalorder %s48, 3
        %s917 = scalar_select %p916, %s48, 3
        %s918 = scalar_lea.vmem %s2, %s917
        %p919 = scmp.lt.s32.totalorder %s48, 3
        %s920 = scalar_select %p919, %s48, 3
        %s921 = smul.addr %s920, 4
        %s922 = smul.addr %s921, 8
        %s923 = scalar_lea.vmem %s6, %s922
        %p924 = scmp.lt.s32.totalorder %s48, 3
        %s925 = scalar_select %p924, %s48, 3
        %s926 = scalar_lea.vmem %s11, %s925
        %s927 = smul.u32 2, %s47
        %p928 = scmp.eq.s32.totalorder %s48, 0
        // Predicated region
        $region129: #{tpu_custom_call.1} parent=91 // pred_check
          %p929 = pneg %p928
        $region130: #{tpu_custom_call.1} parent=91 // pred_check_branch
          %931 = sbr.rel (%p929) target = $region132
        $region131: #{tpu_custom_call.1} parent=91 // pred_region
          %v932 = vld [vmem:[#allocation2] sm:$0xff]
          %v933 = vld [vmem:[#allocation2 + $0x8] sm:$0xff]
          %vm934 = vcmask 261120
          %935 = vst.msk [vmem:[#allocation17] sm:$0xff] %vm934, %v932
          %936 = vst.msk [vmem:[#allocation17 + $0x8] sm:$0xff] %vm934, %v933
        $region132: #{tpu_custom_call.1} parent=91 // pred_fallthru
          _
        %v937 = vld [vmem:[#allocation17] sm:$0xff]
        %v938 = vld [vmem:[#allocation17 + $0x8] sm:$0xff]
        %v939 = vld [vmem:[%s918] sm:$0x1]
        %v940 = vld [vmem:[%s768] sm:$0x1]
        %vm941 = vcmask 261120
        %v942 = vsel %vm941, %v937, 0.0
        %943 = vadd.xlane.f32.xlu0 %v942
        %v944 = vpop.xlane.xlu0 %943
        %v945 = vsel %vm941, %v938, 0.0
        %946 = vadd.xlane.f32.xlu0 %v945
        %v947 = vpop.xlane.xlu0 %946
        %v948 = vrcp.pop 32.0
        %v949 = vmul.f32 32.0, %v948
        %v950 = vsub.f32 1.0, %v949
        %v951 = vmul.f32 %v948, %v950
        %v952 = vadd.f32 %v948, %v951
        %vm953 = vweird.f32 %v948
        %v954 = vsel %vm953, %v948, %v952
        %v955 = vmul.f32 %v944, %v954
        %v956 = vmul.f32 %v947, %v954
        %v957 = vsub.f32 %v937, %v955
        %v958 = vsub.f32 %v938, %v956
        %v959 = vmul.f32 %v957, %v957
        %v960 = vmul.f32 %v958, %v958
        %v961 = vsel %vm941, %v959, 0.0
        %962 = vadd.xlane.f32.xlu0 %v961
        %v963 = vpop.xlane.xlu0 %962
        %v964 = vsel %vm941, %v960, 0.0
        %965 = vadd.xlane.f32.xlu0 %v964
        %v966 = vpop.xlane.xlu0 %965
        %v967 = vmul.f32 %v963, %v954
        %v968 = vmul.f32 %v966, %v954
        %v969 = vadd.f32 %v967, 1e-05
        %v970 = vadd.f32 %v968, 1e-05
        %v971 = vrsqrt.pop %v969
        %v972 = vmul.f32 %v971, %v969
        %v973 = vmul.f32 %v972, %v971
        %v974 = vmul.f32 0.5, %v973
        %v975 = vsub.f32 1.5, %v974
        %v976 = vmul.f32 %v971, %v975
        %vm977 = vweird.f32 %v969
        %vm978 = vweird.f32 %v971
        %vm979 = vmor %vm977, %vm978
        %v980 = vsel %vm979, %v971, %v976
        %v981 = vrsqrt.pop %v970
        %v982 = vmul.f32 %v981, %v970
        %v983 = vmul.f32 %v982, %v981
        %v984 = vmul.f32 0.5, %v983
        %v985 = vsub.f32 1.5, %v984
        %v986 = vmul.f32 %v981, %v985
        %vm987 = vweird.f32 %v970
        %vm988 = vweird.f32 %v981
        %vm989 = vmor %vm987, %vm988
        %v990 = vsel %vm989, %v981, %v986
        %v991 = vmul.f32 %v957, %v980
        %v992 = vmul.f32 %v958, %v990
        %v994 = vperm.slane %v939, 0
        %v996 = vmul.f32 %v991, %v994
        %v997 = vmul.f32 %v992, %v994
        %v999 = vperm.slane %v940, 0
        %v1001 = vadd.f32 %v996, %v999
        %v1002 = vadd.f32 %v997, %v999
        %v1003 = vld [vmem:[%s759] sm:$0xff]
        %v1004 = vld [vmem:[%s759 + $0x8] sm:$0xff]
        %v1005 = vld [vmem:[%s777] sm:$0x1]
        %v1006 = vld [vmem:[%s786] sm:$0x1]
        %v1007 = vsel %vm941, %v1003, 0.0
        %1008 = vadd.xlane.f32.xlu0 %v1007
        %v1009 = vpop.xlane.xlu0 %1008
        %v1010 = vsel %vm941, %v1004, 0.0
        %1011 = vadd.xlane.f32.xlu0 %v1010
        %v1012 = vpop.xlane.xlu0 %1011
        %v1013 = vmul.f32 %v1009, %v954
        %v1014 = vmul.f32 %v1012, %v954
        %v1015 = vsub.f32 %v1003, %v1013
        %v1016 = vsub.f32 %v1004, %v1014
        %v1017 = vmul.f32 %v1015, %v1015
        %v1018 = vmul.f32 %v1016, %v1016
        %v1019 = vsel %vm941, %v1017, 0.0
        %1020 = vadd.xlane.f32.xlu0 %v1019
        %v1021 = vpop.xlane.xlu0 %1020
        %v1022 = vsel %vm941, %v1018, 0.0
        %1023 = vadd.xlane.f32.xlu0 %v1022
        %v1024 = vpop.xlane.xlu0 %1023
        %v1025 = vmul.f32 %v1021, %v954
        %v1026 = vmul.f32 %v1024, %v954
        %v1027 = vadd.f32 %v1025, 1e-05
        %v1028 = vadd.f32 %v1026, 1e-05
        %v1029 = vrsqrt.pop %v1027
        %v1030 = vmul.f32 %v1029, %v1027
        %v1031 = vmul.f32 %v1030, %v1029
        %v1032 = vmul.f32 0.5, %v1031
        %v1033 = vsub.f32 1.5, %v1032
        %v1034 = vmul.f32 %v1029, %v1033
        %vm1035 = vweird.f32 %v1027
        %vm1036 = vweird.f32 %v1029
        %vm1037 = vmor %vm1035, %vm1036
        %v1038 = vsel %vm1037, %v1029, %v1034
        %v1039 = vrsqrt.pop %v1028
        %v1040 = vmul.f32 %v1039, %v1028
        %v1041 = vmul.f32 %v1040, %v1039
        %v1042 = vmul.f32 0.5, %v1041
        %v1043 = vsub.f32 1.5, %v1042
        %v1044 = vmul.f32 %v1039, %v1043
        %vm1045 = vweird.f32 %v1028
        %vm1046 = vweird.f32 %v1039
        %vm1047 = vmor %vm1045, %vm1046
        %v1048 = vsel %vm1047, %v1039, %v1044
        %v1049 = vmul.f32 %v1015, %v1038
        %v1050 = vmul.f32 %v1016, %v1048
        %v1052 = vperm.slane %v1005, 0
        %v1054 = vmul.f32 %v1049, %v1052
        %v1055 = vmul.f32 %v1050, %v1052
        %v1057 = vperm.slane %v1006, 0
        %v1059 = vadd.f32 %v1054, %v1057
        %v1060 = vadd.f32 %v1055, %v1057
        %v1061 = vld [vmem:[%s923] sm:$0xff]
        %v1062 = vld [vmem:[%s923 + $0x8] sm:$0xff]
        %v1063 = vld [vmem:[%s923 + $0x10] sm:$0xff]
        %v1064 = vld [vmem:[%s923 + $0x18] sm:$0xff]
        %v1065 = vld [vmem:[%s795] sm:$0x1]
        %v1067 = vperm.slane %v1065, 0
        %v1070 = vsel %vm941, %v1059, 0
        %v1073 = vsel %vm941, %v1060, 0
        %1075 = vmatpush.msra.mxu0 0.0
        %1076 = vmatpush.msra.mxu0 0.0
        %1077 = vmatpush.msra.mxu0 0.0
        %1078 = vmatpush.msra.mxu0 0.0
        %1079 = vmatpush.msra.mxu0 0.0
        %1080 = vmatpush.msra.mxu0 0.0
        %1081 = vmatpush.msra.mxu0 0.0
        %1082 = vmatpush.msra.mxu0 0.0
        %1083 = vmatpush.msra.mxu0 0.0
        %1084 = vmatpush.msra.mxu0 0.0
        %1085 = vmatpush.msra.mxu0 0.0
        %1086 = vmatpush.msra.mxu0 0.0
        %1087 = vmatpush.msra.mxu0 %v1064
        %1088 = vmatpush.msra.mxu0 %v1063
        %1089 = vmatpush.msra.mxu0 %v1062
        %1090 = vmatpush.msra.mxu0 %v1061
        %1091 = vmatmul.f32.gmra.mxu0 %v1070
        %v1092 = vpop.f32.mrf.mxu0
        %v1093 = vadd.f32 %v1067, %v1092
        %1094 = vmatmul.f32.gmra.mxu0 %v1073
        %v1095 = vpop.f32.mrf.mxu0
        %v1096 = vadd.f32 %v1067, %v1095
        %1097 = vdwg.mxu0
        %v1098 = vmul.f32 %v1093, 0.35355338
        %v1099 = vmul.f32 %v1096, 0.35355338
        %v1100 = vld [vmem:[%s805] sm:$0xff]
        %v1101 = vld [vmem:[%s805 + $0x8] sm:$0xff]
        %v1102 = vld [vmem:[%s805 + $0x10] sm:$0xff]
        %v1103 = vld [vmem:[%s805 + $0x18] sm:$0xff]
        %v1104 = vld [vmem:[%s814] sm:$0x1]
        %v1106 = vperm.slane %v1104, 0
        %v1109 = vsel %vm941, %v1001, 0
        %v1112 = vsel %vm941, %v1002, 0
        %1114 = vmatpush.msra.mxu0 0.0
        %1115 = vmatpush.msra.mxu0 0.0
        %1116 = vmatpush.msra.mxu0 0.0
        %1117 = vmatpush.msra.mxu0 0.0
        %1118 = vmatpush.msra.mxu0 0.0
        %1119 = vmatpush.msra.mxu0 0.0
        %1120 = vmatpush.msra.mxu0 0.0
        %1121 = vmatpush.msra.mxu0 0.0
        %1122 = vmatpush.msra.mxu0 0.0
        %1123 = vmatpush.msra.mxu0 0.0
        %1124 = vmatpush.msra.mxu0 0.0
        %1125 = vmatpush.msra.mxu0 0.0
        %1126 = vmatpush.msra.mxu0 %v1103
        %1127 = vmatpush.msra.mxu0 %v1102
        %1128 = vmatpush.msra.mxu0 %v1101
        %1129 = vmatpush.msra.mxu0 %v1100
        %1130 = vmatmul.f32.gmra.mxu0 %v1109
        %v1131 = vpop.f32.mrf.mxu0
        %v1132 = vadd.f32 %v1106, %v1131
        %1133 = vmatmul.f32.gmra.mxu0 %v1112
        %v1134 = vpop.f32.mrf.mxu0
        %v1135 = vadd.f32 %v1106, %v1134
        %1136 = vdwg.mxu0
        %v1137 = vld [vmem:[%s824] sm:$0xff]
        %v1138 = vld [vmem:[%s824 + $0x8] sm:$0xff]
        %v1139 = vld [vmem:[%s824 + $0x10] sm:$0xff]
        %v1140 = vld [vmem:[%s824 + $0x18] sm:$0xff]
        %v1141 = vld [vmem:[%s926] sm:$0x1]
        %v1143 = vperm.slane %v1141, 0
        %v1145 = vadd.f32 %v937, %v1143
        %v1146 = vadd.f32 %v938, %v1143
        %vm1147 = vcmask 64512
        %v1149 = vsel %vm1147, %v1098, 0
        %v1152 = vsel %vm1147, %v1132, 0
        %1154 = vmatpush.xpose.msra.mxu0 0.0
        %1155 = vmatpush.xpose.msra.mxu0 0.0
        %1156 = vmatpush.xpose.msra.mxu0 0.0
        %1157 = vmatpush.xpose.msra.mxu0 0.0
        %1158 = vmatpush.xpose.msra.mxu0 0.0
        %1159 = vmatpush.xpose.msra.mxu0 0.0
        %1160 = vmatpush.xpose.msra.mxu0 0.0
        %1161 = vmatpush.xpose.msra.mxu0 0.0
        %1162 = vmatpush.xpose.msra.mxu0 0.0
        %1163 = vmatpush.xpose.msra.mxu0 0.0
        %1164 = vmatpush.xpose.msra.mxu0 0.0
        %1165 = vmatpush.xpose.msra.mxu0 0.0
        %1166 = vmatpush.xpose.msra.mxu0 0.0
        %1167 = vmatpush.xpose.msra.mxu0 0.0
        %1168 = vmatpush.xpose.msra.mxu0 0.0
        %1169 = vmatpush.xpose.msra.mxu0 %v1152
        %1170 = vmatmul.f32.gmra.mxu0 %v1149
        %v1171 = vpop.f32.mrf.mxu0
        %v1172 = vadd.f32 0.0, %v1171
        %1173 = vdwg.mxu0
        %v1175 = vsel %vm1147, %v1099, 0
        %v1178 = vsel %vm1147, %v1135, 0
        %1180 = vmatpush.xpose.msra.mxu0 0.0
        %1181 = vmatpush.xpose.msra.mxu0 0.0
        %1182 = vmatpush.xpose.msra.mxu0 0.0
        %1183 = vmatpush.xpose.msra.mxu0 0.0
        %1184 = vmatpush.xpose.msra.mxu0 0.0
        %1185 = vmatpush.xpose.msra.mxu0 0.0
        %1186 = vmatpush.xpose.msra.mxu0 0.0
        %1187 = vmatpush.xpose.msra.mxu0 0.0
        %1188 = vmatpush.xpose.msra.mxu0 0.0
        %1189 = vmatpush.xpose.msra.mxu0 0.0
        %1190 = vmatpush.xpose.msra.mxu0 0.0
        %1191 = vmatpush.xpose.msra.mxu0 0.0
        %1192 = vmatpush.xpose.msra.mxu0 0.0
        %1193 = vmatpush.xpose.msra.mxu0 0.0
        %1194 = vmatpush.xpose.msra.mxu0 0.0
        %1195 = vmatpush.xpose.msra.mxu0 %v1178
        %1196 = vmatmul.f32.gmra.mxu0 %v1175
        %v1197 = vpop.f32.mrf.mxu0
        %v1198 = vadd.f32 0.0, %v1197
        %1199 = vdwg.mxu0
        %v1200 = vsel %vm1147, %v1172, -inf
        %1201 = vmax.xlane.f32.xlu0 %v1200
        %v1202 = vpop.xlane.xlu0 %1201
        %v1203 = vsel %vm1147, %v1198, -inf
        %1204 = vmax.xlane.f32.xlu0 %v1203
        %v1205 = vpop.xlane.xlu0 %1204
        %v1206 = vsub.f32 %v1172, %v1202
        %v1207 = vsub.f32 %v1198, %v1205
        %v1208 = vmul.f32 %v1206, 1.442695
        %v1209 = vpow.pop %v1208
        %v1210 = vmul.f32 %v1207, 1.442695
        %v1211 = vpow.pop %v1210
        %v1212 = vsel %vm1147, %v1209, 0.0
        %1213 = vadd.xlane.f32.xlu0 %v1212
        %v1214 = vpop.xlane.xlu0 %1213
        %v1215 = vsel %vm1147, %v1211, 0.0
        %1216 = vadd.xlane.f32.xlu0 %v1215
        %v1217 = vpop.xlane.xlu0 %1216
        %v1218 = vrcp.pop %v1214
        %v1219 = vmul.f32 %v1214, %v1218
        %v1220 = vsub.f32 1.0, %v1219
        %v1221 = vmul.f32 %v1218, %v1220
        %v1222 = vadd.f32 %v1218, %v1221
        %vm1223 = vweird.f32 %v1214
        %vm1224 = vweird.f32 %v1218
        %vm1225 = vmor %vm1223, %vm1224
        %v1226 = vsel %vm1225, %v1218, %v1222
        %v1227 = vand.u32 2147483647, %v1214
        %vm1228 = vcmp.eq.f32.partialorder %v1227, 8.507059e+37
        %v1229 = vand.u32 %v1214, 2147483648
        %v1230 = vor.u32 1.1754944e-38, %v1229
        %v1231 = vsel %vm1228, %v1230, %v1226
        %v1232 = vmul.f32 %v1209, %v1231
        %v1233 = vrcp.pop %v1217
        %v1234 = vmul.f32 %v1217, %v1233
        %v1235 = vsub.f32 1.0, %v1234
        %v1236 = vmul.f32 %v1233, %v1235
        %v1237 = vadd.f32 %v1233, %v1236
        %vm1238 = vweird.f32 %v1217
        %vm1239 = vweird.f32 %v1233
        %vm1240 = vmor %vm1238, %vm1239
        %v1241 = vsel %vm1240, %v1233, %v1237
        %v1242 = vand.u32 2147483647, %v1217
        %vm1243 = vcmp.eq.f32.partialorder %v1242, 8.507059e+37
        %v1244 = vand.u32 %v1217, 2147483648
        %v1245 = vor.u32 1.1754944e-38, %v1244
        %v1246 = vsel %vm1243, %v1245, %v1241
        %v1247 = vmul.f32 %v1211, %v1246
        %1248 = vrot.lane.b32.xlu0 %v1132, 96
        %v1249 = vpop.permute.xlu0 %1248
        %v1252 = vsel %vm1147, %v1232, 0
        %1254 = vmatpush.msra.mxu0 0.0
        %1255 = vmatpush.msra.mxu0 0.0
        %1256 = vmatpush.msra.mxu0 0.0
        %1257 = vmatpush.msra.mxu0 0.0
        %1258 = vmatpush.msra.mxu0 0.0
        %1259 = vmatpush.msra.mxu0 0.0
        %1260 = vmatpush.msra.mxu0 0.0
        %1261 = vmatpush.msra.mxu0 0.0
        %1262 = vmatpush.msra.mxu0 0.0
        %1263 = vmatpush.msra.mxu0 0.0
        %1264 = vmatpush.msra.mxu0 0.0
        %1265 = vmatpush.msra.mxu0 0.0
        %1266 = vmatpush.msra.mxu0 0.0
        %1267 = vmatpush.msra.mxu0 0.0
        %1268 = vmatpush.msra.mxu0 0.0
        %1269 = vmatpush.msra.mxu0 %v1249
        %1270 = vmatmul.f32.gmra.mxu0 %v1252
        %v1271 = vpop.f32.mrf.mxu0
        %v1272 = vadd.f32 0.0, %v1271
        %1273 = vdwg.mxu0
        %1274 = vrot.lane.b32.xlu0 %v1135, 96
        %v1275 = vpop.permute.xlu0 %1274
        %v1278 = vsel %vm1147, %v1247, 0
        %1280 = vmatpush.msra.mxu0 0.0
        %1281 = vmatpush.msra.mxu0 0.0
        %1282 = vmatpush.msra.mxu0 0.0
        %1283 = vmatpush.msra.mxu0 0.0
        %1284 = vmatpush.msra.mxu0 0.0
        %1285 = vmatpush.msra.mxu0 0.0
        %1286 = vmatpush.msra.mxu0 0.0
        %1287 = vmatpush.msra.mxu0 0.0
        %1288 = vmatpush.msra.mxu0 0.0
        %1289 = vmatpush.msra.mxu0 0.0
        %1290 = vmatpush.msra.mxu0 0.0
        %1291 = vmatpush.msra.mxu0 0.0
        %1292 = vmatpush.msra.mxu0 0.0
        %1293 = vmatpush.msra.mxu0 0.0
        %1294 = vmatpush.msra.mxu0 0.0
        %1295 = vmatpush.msra.mxu0 %v1275
        %1296 = vmatmul.f32.gmra.mxu0 %v1278
        %v1297 = vpop.f32.mrf.mxu0
        %v1298 = vadd.f32 0.0, %v1297
        %1299 = vdwg.mxu0
        %v1301 = vsel %vm1147, %v1272, 0
        %v1304 = vsel %vm1147, %v1298, 0
        %1306 = vmatpush.msra.mxu0 0.0
        %1307 = vmatpush.msra.mxu0 0.0
        %1308 = vmatpush.msra.mxu0 0.0
        %1309 = vmatpush.msra.mxu0 0.0
        %1310 = vmatpush.msra.mxu0 0.0
        %1311 = vmatpush.msra.mxu0 0.0
        %1312 = vmatpush.msra.mxu0 0.0
        %1313 = vmatpush.msra.mxu0 0.0
        %1314 = vmatpush.msra.mxu0 0.0
        %1315 = vmatpush.msra.mxu0 0.0
        %1316 = vmatpush.msra.mxu0 0.0
        %1317 = vmatpush.msra.mxu0 0.0
        %1318 = vmatpush.msra.mxu0 0.0
        %1319 = vmatpush.msra.mxu0 0.0
        %1320 = vmatpush.msra.mxu0 0.0
        %1321 = vmatpush.msra.mxu0 %v1137
        %1322 = vmatmul.f32.gmra.mxu0 %v1301
        %v1323 = vpop.f32.mrf.mxu0
        %v1324 = vadd.f32 0.0, %v1323
        %1325 = vmatmul.f32.gmra.mxu0 %v1304
        %v1326 = vpop.f32.mrf.mxu0
        %v1327 = vadd.f32 0.0, %v1326
        %1328 = vdwg.mxu0
        %v1329 = vadd.f32 %v1145, %v1324
        %v1330 = vadd.f32 %v1146, %v1327
        %1331 = vrot.lane.b32.xlu0 %v1098, 120
        %v1332 = vpop.permute.xlu0 %1331
        %1333 = vrot.lane.b32.xlu0 %v1132, 120
        %v1334 = vpop.permute.xlu0 %1333
        %v1335 = vsel %vm1147, %v1332, 0
        %v1337 = vsel %vm1147, %v1334, 0
        %1339 = vmatpush.xpose.msra.mxu0 0.0
        %1340 = vmatpush.xpose.msra.mxu0 0.0
        %1341 = vmatpush.xpose.msra.mxu0 0.0
        %1342 = vmatpush.xpose.msra.mxu0 0.0
        %1343 = vmatpush.xpose.msra.mxu0 0.0
        %1344 = vmatpush.xpose.msra.mxu0 0.0
        %1345 = vmatpush.xpose.msra.mxu0 0.0
        %1346 = vmatpush.xpose.msra.mxu0 0.0
        %1347 = vmatpush.xpose.msra.mxu0 0.0
        %1348 = vmatpush.xpose.msra.mxu0 0.0
        %1349 = vmatpush.xpose.msra.mxu0 0.0
        %1350 = vmatpush.xpose.msra.mxu0 0.0
        %1351 = vmatpush.xpose.msra.mxu0 0.0
        %1352 = vmatpush.xpose.msra.mxu0 0.0
        %1353 = vmatpush.xpose.msra.mxu0 0.0
        %1354 = vmatpush.xpose.msra.mxu0 %v1337
        %1355 = vmatmul.f32.gmra.mxu0 %v1335
        %v1356 = vpop.f32.mrf.mxu0
        %v1357 = vadd.f32 0.0, %v1356
        %1358 = vdwg.mxu0
        %1359 = vrot.lane.b32.xlu0 %v1099, 120
        %v1360 = vpop.permute.xlu0 %1359
        %1361 = vrot.lane.b32.xlu0 %v1135, 120
        %v1362 = vpop.permute.xlu0 %1361
        %v1363 = vsel %vm1147, %v1360, 0
        %v1365 = vsel %vm1147, %v1362, 0
        %1367 = vmatpush.xpose.msra.mxu0 0.0
        %1368 = vmatpush.xpose.msra.mxu0 0.0
        %1369 = vmatpush.xpose.msra.mxu0 0.0
        %1370 = vmatpush.xpose.msra.mxu0 0.0
        %1371 = vmatpush.xpose.msra.mxu0 0.0
        %1372 = vmatpush.xpose.msra.mxu0 0.0
        %1373 = vmatpush.xpose.msra.mxu0 0.0
        %1374 = vmatpush.xpose.msra.mxu0 0.0
        %1375 = vmatpush.xpose.msra.mxu0 0.0
        %1376 = vmatpush.xpose.msra.mxu0 0.0
        %1377 = vmatpush.xpose.msra.mxu0 0.0
        %1378 = vmatpush.xpose.msra.mxu0 0.0
        %1379 = vmatpush.xpose.msra.mxu0 0.0
        %1380 = vmatpush.xpose.msra.mxu0 0.0
        %1381 = vmatpush.xpose.msra.mxu0 0.0
        %1382 = vmatpush.xpose.msra.mxu0 %v1365
        %1383 = vmatmul.f32.gmra.mxu0 %v1363
        %v1384 = vpop.f32.mrf.mxu0
        %v1385 = vadd.f32 0.0, %v1384
        %1386 = vdwg.mxu0
        %v1387 = vsel %vm1147, %v1357, -inf
        %1388 = vmax.xlane.f32.xlu0 %v1387
        %v1389 = vpop.xlane.xlu0 %1388
        %v1390 = vsel %vm1147, %v1385, -inf
        %1391 = vmax.xlane.f32.xlu0 %v1390
        %v1392 = vpop.xlane.xlu0 %1391
        %v1393 = vsub.f32 %v1357, %v1389
        %v1394 = vsub.f32 %v1385, %v1392
        %v1395 = vmul.f32 %v1393, 1.442695
        %v1396 = vpow.pop %v1395
        %v1397 = vmul.f32 %v1394, 1.442695
        %v1398 = vpow.pop %v1397
        %v1399 = vsel %vm1147, %v1396, 0.0
        %1400 = vadd.xlane.f32.xlu0 %v1399
        %v1401 = vpop.xlane.xlu0 %1400
        %v1402 = vsel %vm1147, %v1398, 0.0
        %1403 = vadd.xlane.f32.xlu0 %v1402
        %v1404 = vpop.xlane.xlu0 %1403
        %v1405 = vrcp.pop %v1401
        %v1406 = vmul.f32 %v1401, %v1405
        %v1407 = vsub.f32 1.0, %v1406
        %v1408 = vmul.f32 %v1405, %v1407
        %v1409 = vadd.f32 %v1405, %v1408
        %vm1410 = vweird.f32 %v1401
        %vm1411 = vweird.f32 %v1405
        %vm1412 = vmor %vm1410, %vm1411
        %v1413 = vsel %vm1412, %v1405, %v1409
        %v1414 = vand.u32 2147483647, %v1401
        %vm1415 = vcmp.eq.f32.partialorder %v1414, 8.507059e+37
        %v1416 = vand.u32 %v1401, 2147483648
        %v1417 = vor.u32 1.1754944e-38, %v1416
        %v1418 = vsel %vm1415, %v1417, %v1413
        %v1419 = vmul.f32 %v1396, %v1418
        %v1420 = vrcp.pop %v1404
        %v1421 = vmul.f32 %v1404, %v1420
        %v1422 = vsub.f32 1.0, %v1421
        %v1423 = vmul.f32 %v1420, %v1422
        %v1424 = vadd.f32 %v1420, %v1423
        %vm1425 = vweird.f32 %v1404
        %vm1426 = vweird.f32 %v1420
        %vm1427 = vmor %vm1425, %vm1426
        %v1428 = vsel %vm1427, %v1420, %v1424
        %v1429 = vand.u32 2147483647, %v1404
        %vm1430 = vcmp.eq.f32.partialorder %v1429, 8.507059e+37
        %v1431 = vand.u32 %v1404, 2147483648
        %v1432 = vor.u32 1.1754944e-38, %v1431
        %v1433 = vsel %vm1430, %v1432, %v1428
        %v1434 = vmul.f32 %v1398, %v1433
        %1435 = vrot.lane.b32.xlu0 %v1132, 88
        %v1436 = vpop.permute.xlu0 %1435
        %v1439 = vsel %vm1147, %v1419, 0
        %1441 = vmatpush.msra.mxu0 0.0
        %1442 = vmatpush.msra.mxu0 0.0
        %1443 = vmatpush.msra.mxu0 0.0
        %1444 = vmatpush.msra.mxu0 0.0
        %1445 = vmatpush.msra.mxu0 0.0
        %1446 = vmatpush.msra.mxu0 0.0
        %1447 = vmatpush.msra.mxu0 0.0
        %1448 = vmatpush.msra.mxu0 0.0
        %1449 = vmatpush.msra.mxu0 0.0
        %1450 = vmatpush.msra.mxu0 0.0
        %1451 = vmatpush.msra.mxu0 0.0
        %1452 = vmatpush.msra.mxu0 0.0
        %1453 = vmatpush.msra.mxu0 0.0
        %1454 = vmatpush.msra.mxu0 0.0
        %1455 = vmatpush.msra.mxu0 0.0
        %1456 = vmatpush.msra.mxu0 %v1436
        %1457 = vmatmul.f32.gmra.mxu0 %v1439
        %v1458 = vpop.f32.mrf.mxu0
        %v1459 = vadd.f32 0.0, %v1458
        %1460 = vdwg.mxu0
        %1461 = vrot.lane.b32.xlu0 %v1135, 88
        %v1462 = vpop.permute.xlu0 %1461
        %v1465 = vsel %vm1147, %v1434, 0
        %1467 = vmatpush.msra.mxu0 0.0
        %1468 = vmatpush.msra.mxu0 0.0
        %1469 = vmatpush.msra.mxu0 0.0
        %1470 = vmatpush.msra.mxu0 0.0
        %1471 = vmatpush.msra.mxu0 0.0
        %1472 = vmatpush.msra.mxu0 0.0
        %1473 = vmatpush.msra.mxu0 0.0
        %1474 = vmatpush.msra.mxu0 0.0
        %1475 = vmatpush.msra.mxu0 0.0
        %1476 = vmatpush.msra.mxu0 0.0
        %1477 = vmatpush.msra.mxu0 0.0
        %1478 = vmatpush.msra.mxu0 0.0
        %1479 = vmatpush.msra.mxu0 0.0
        %1480 = vmatpush.msra.mxu0 0.0
        %1481 = vmatpush.msra.mxu0 0.0
        %1482 = vmatpush.msra.mxu0 %v1462
        %1483 = vmatmul.f32.gmra.mxu0 %v1465
        %v1484 = vpop.f32.mrf.mxu0
        %v1485 = vadd.f32 0.0, %v1484
        %1486 = vdwg.mxu0
        %v1488 = vsel %vm1147, %v1459, 0
        %v1491 = vsel %vm1147, %v1485, 0
        %1493 = vmatpush.msra.mxu0 0.0
        %1494 = vmatpush.msra.mxu0 0.0
        %1495 = vmatpush.msra.mxu0 0.0
        %1496 = vmatpush.msra.mxu0 0.0
        %1497 = vmatpush.msra.mxu0 0.0
        %1498 = vmatpush.msra.mxu0 0.0
        %1499 = vmatpush.msra.mxu0 0.0
        %1500 = vmatpush.msra.mxu0 0.0
        %1501 = vmatpush.msra.mxu0 0.0
        %1502 = vmatpush.msra.mxu0 0.0
        %1503 = vmatpush.msra.mxu0 0.0
        %1504 = vmatpush.msra.mxu0 0.0
        %1505 = vmatpush.msra.mxu0 0.0
        %1506 = vmatpush.msra.mxu0 0.0
        %1507 = vmatpush.msra.mxu0 0.0
        %1508 = vmatpush.msra.mxu0 %v1138
        %1509 = vmatmul.f32.gmra.mxu0 %v1488
        %v1510 = vpop.f32.mrf.mxu0
        %v1511 = vadd.f32 0.0, %v1510
        %1512 = vmatmul.f32.gmra.mxu0 %v1491
        %v1513 = vpop.f32.mrf.mxu0
        %v1514 = vadd.f32 0.0, %v1513
        %1515 = vdwg.mxu0
        %v1516 = vadd.f32 %v1329, %v1511
        %v1517 = vadd.f32 %v1330, %v1514
        %1518 = vrot.lane.b32.xlu0 %v1098, 112
        %v1519 = vpop.permute.xlu0 %1518
        %1520 = vrot.lane.b32.xlu0 %v1132, 112
        %v1521 = vpop.permute.xlu0 %1520
        %v1522 = vsel %vm1147, %v1519, 0
        %v1524 = vsel %vm1147, %v1521, 0
        %1526 = vmatpush.xpose.msra.mxu0 0.0
        %1527 = vmatpush.xpose.msra.mxu0 0.0
        %1528 = vmatpush.xpose.msra.mxu0 0.0
        %1529 = vmatpush.xpose.msra.mxu0 0.0
        %1530 = vmatpush.xpose.msra.mxu0 0.0
        %1531 = vmatpush.xpose.msra.mxu0 0.0
        %1532 = vmatpush.xpose.msra.mxu0 0.0
        %1533 = vmatpush.xpose.msra.mxu0 0.0
        %1534 = vmatpush.xpose.msra.mxu0 0.0
        %1535 = vmatpush.xpose.msra.mxu0 0.0
        %1536 = vmatpush.xpose.msra.mxu0 0.0
        %1537 = vmatpush.xpose.msra.mxu0 0.0
        %1538 = vmatpush.xpose.msra.mxu0 0.0
        %1539 = vmatpush.xpose.msra.mxu0 0.0
        %1540 = vmatpush.xpose.msra.mxu0 0.0
        %1541 = vmatpush.xpose.msra.mxu0 %v1524
        %1542 = vmatmul.f32.gmra.mxu0 %v1522
        %v1543 = vpop.f32.mrf.mxu0
        %v1544 = vadd.f32 0.0, %v1543
        %1545 = vdwg.mxu0
        %1546 = vrot.lane.b32.xlu0 %v1099, 112
        %v1547 = vpop.permute.xlu0 %1546
        %1548 = vrot.lane.b32.xlu0 %v1135, 112
        %v1549 = vpop.permute.xlu0 %1548
        %v1550 = vsel %vm1147, %v1547, 0
        %v1552 = vsel %vm1147, %v1549, 0
        %1554 = vmatpush.xpose.msra.mxu0 0.0
        %1555 = vmatpush.xpose.msra.mxu0 0.0
        %1556 = vmatpush.xpose.msra.mxu0 0.0
        %1557 = vmatpush.xpose.msra.mxu0 0.0
        %1558 = vmatpush.xpose.msra.mxu0 0.0
        %1559 = vmatpush.xpose.msra.mxu0 0.0
        %1560 = vmatpush.xpose.msra.mxu0 0.0
        %1561 = vmatpush.xpose.msra.mxu0 0.0
        %1562 = vmatpush.xpose.msra.mxu0 0.0
        %1563 = vmatpush.xpose.msra.mxu0 0.0
        %1564 = vmatpush.xpose.msra.mxu0 0.0
        %1565 = vmatpush.xpose.msra.mxu0 0.0
        %1566 = vmatpush.xpose.msra.mxu0 0.0
        %1567 = vmatpush.xpose.msra.mxu0 0.0
        %1568 = vmatpush.xpose.msra.mxu0 0.0
        %1569 = vmatpush.xpose.msra.mxu0 %v1552
        %1570 = vmatmul.f32.gmra.mxu0 %v1550
        %v1571 = vpop.f32.mrf.mxu0
        %v1572 = vadd.f32 0.0, %v1571
        %1573 = vdwg.mxu0
        %v1574 = vsel %vm1147, %v1544, -inf
        %1575 = vmax.xlane.f32.xlu0 %v1574
        %v1576 = vpop.xlane.xlu0 %1575
        %v1577 = vsel %vm1147, %v1572, -inf
        %1578 = vmax.xlane.f32.xlu0 %v1577
        %v1579 = vpop.xlane.xlu0 %1578
        %v1580 = vsub.f32 %v1544, %v1576
        %v1581 = vsub.f32 %v1572, %v1579
        %v1582 = vmul.f32 %v1580, 1.442695
        %v1583 = vpow.pop %v1582
        %v1584 = vmul.f32 %v1581, 1.442695
        %v1585 = vpow.pop %v1584
        %v1586 = vsel %vm1147, %v1583, 0.0
        %1587 = vadd.xlane.f32.xlu0 %v1586
        %v1588 = vpop.xlane.xlu0 %1587
        %v1589 = vsel %vm1147, %v1585, 0.0
        %1590 = vadd.xlane.f32.xlu0 %v1589
        %v1591 = vpop.xlane.xlu0 %1590
        %v1592 = vrcp.pop %v1588
        %v1593 = vmul.f32 %v1588, %v1592
        %v1594 = vsub.f32 1.0, %v1593
        %v1595 = vmul.f32 %v1592, %v1594
        %v1596 = vadd.f32 %v1592, %v1595
        %vm1597 = vweird.f32 %v1588
        %vm1598 = vweird.f32 %v1592
        %vm1599 = vmor %vm1597, %vm1598
        %v1600 = vsel %vm1599, %v1592, %v1596
        %v1601 = vand.u32 2147483647, %v1588
        %vm1602 = vcmp.eq.f32.partialorder %v1601, 8.507059e+37
        %v1603 = vand.u32 %v1588, 2147483648
        %v1604 = vor.u32 1.1754944e-38, %v1603
        %v1605 = vsel %vm1602, %v1604, %v1600
        %v1606 = vmul.f32 %v1583, %v1605
        %v1607 = vrcp.pop %v1591
        %v1608 = vmul.f32 %v1591, %v1607
        %v1609 = vsub.f32 1.0, %v1608
        %v1610 = vmul.f32 %v1607, %v1609
        %v1611 = vadd.f32 %v1607, %v1610
        %vm1612 = vweird.f32 %v1591
        %vm1613 = vweird.f32 %v1607
        %vm1614 = vmor %vm1612, %vm1613
        %v1615 = vsel %vm1614, %v1607, %v1611
        %v1616 = vand.u32 2147483647, %v1591
        %vm1617 = vcmp.eq.f32.partialorder %v1616, 8.507059e+37
        %v1618 = vand.u32 %v1591, 2147483648
        %v1619 = vor.u32 1.1754944e-38, %v1618
        %v1620 = vsel %vm1617, %v1619, %v1615
        %v1621 = vmul.f32 %v1585, %v1620
        %1622 = vrot.lane.b32.xlu0 %v1132, 80
        %v1623 = vpop.permute.xlu0 %1622
        %v1626 = vsel %vm1147, %v1606, 0
        %1628 = vmatpush.msra.mxu0 0.0
        %1629 = vmatpush.msra.mxu0 0.0
        %1630 = vmatpush.msra.mxu0 0.0
        %1631 = vmatpush.msra.mxu0 0.0
        %1632 = vmatpush.msra.mxu0 0.0
        %1633 = vmatpush.msra.mxu0 0.0
        %1634 = vmatpush.msra.mxu0 0.0
        %1635 = vmatpush.msra.mxu0 0.0
        %1636 = vmatpush.msra.mxu0 0.0
        %1637 = vmatpush.msra.mxu0 0.0
        %1638 = vmatpush.msra.mxu0 0.0
        %1639 = vmatpush.msra.mxu0 0.0
        %1640 = vmatpush.msra.mxu0 0.0
        %1641 = vmatpush.msra.mxu0 0.0
        %1642 = vmatpush.msra.mxu0 0.0
        %1643 = vmatpush.msra.mxu0 %v1623
        %1644 = vmatmul.f32.gmra.mxu0 %v1626
        %v1645 = vpop.f32.mrf.mxu0
        %v1646 = vadd.f32 0.0, %v1645
        %1647 = vdwg.mxu0
        %1648 = vrot.lane.b32.xlu0 %v1135, 80
        %v1649 = vpop.permute.xlu0 %1648
        %v1652 = vsel %vm1147, %v1621, 0
        %1654 = vmatpush.msra.mxu0 0.0
        %1655 = vmatpush.msra.mxu0 0.0
        %1656 = vmatpush.msra.mxu0 0.0
        %1657 = vmatpush.msra.mxu0 0.0
        %1658 = vmatpush.msra.mxu0 0.0
        %1659 = vmatpush.msra.mxu0 0.0
        %1660 = vmatpush.msra.mxu0 0.0
        %1661 = vmatpush.msra.mxu0 0.0
        %1662 = vmatpush.msra.mxu0 0.0
        %1663 = vmatpush.msra.mxu0 0.0
        %1664 = vmatpush.msra.mxu0 0.0
        %1665 = vmatpush.msra.mxu0 0.0
        %1666 = vmatpush.msra.mxu0 0.0
        %1667 = vmatpush.msra.mxu0 0.0
        %1668 = vmatpush.msra.mxu0 0.0
        %1669 = vmatpush.msra.mxu0 %v1649
        %1670 = vmatmul.f32.gmra.mxu0 %v1652
        %v1671 = vpop.f32.mrf.mxu0
        %v1672 = vadd.f32 0.0, %v1671
        %1673 = vdwg.mxu0
        %v1675 = vsel %vm1147, %v1646, 0
        %v1678 = vsel %vm1147, %v1672, 0
        %1680 = vmatpush.msra.mxu0 0.0
        %1681 = vmatpush.msra.mxu0 0.0
        %1682 = vmatpush.msra.mxu0 0.0
        %1683 = vmatpush.msra.mxu0 0.0
        %1684 = vmatpush.msra.mxu0 0.0
        %1685 = vmatpush.msra.mxu0 0.0
        %1686 = vmatpush.msra.mxu0 0.0
        %1687 = vmatpush.msra.mxu0 0.0
        %1688 = vmatpush.msra.mxu0 0.0
        %1689 = vmatpush.msra.mxu0 0.0
        %1690 = vmatpush.msra.mxu0 0.0
        %1691 = vmatpush.msra.mxu0 0.0
        %1692 = vmatpush.msra.mxu0 0.0
        %1693 = vmatpush.msra.mxu0 0.0
        %1694 = vmatpush.msra.mxu0 0.0
        %1695 = vmatpush.msra.mxu0 %v1139
        %1696 = vmatmul.f32.gmra.mxu0 %v1675
        %v1697 = vpop.f32.mrf.mxu0
        %v1698 = vadd.f32 0.0, %v1697
        %1699 = vmatmul.f32.gmra.mxu0 %v1678
        %v1700 = vpop.f32.mrf.mxu0
        %v1701 = vadd.f32 0.0, %v1700
        %1702 = vdwg.mxu0
        %v1703 = vadd.f32 %v1516, %v1698
        %v1704 = vadd.f32 %v1517, %v1701
        %1705 = vrot.lane.b32.xlu0 %v1098, 104
        %v1706 = vpop.permute.xlu0 %1705
        %1707 = vrot.lane.b32.xlu0 %v1132, 104
        %v1708 = vpop.permute.xlu0 %1707
        %v1709 = vsel %vm1147, %v1706, 0
        %v1711 = vsel %vm1147, %v1708, 0
        %1713 = vmatpush.xpose.msra.mxu0 0.0
        %1714 = vmatpush.xpose.msra.mxu0 0.0
        %1715 = vmatpush.xpose.msra.mxu0 0.0
        %1716 = vmatpush.xpose.msra.mxu0 0.0
        %1717 = vmatpush.xpose.msra.mxu0 0.0
        %1718 = vmatpush.xpose.msra.mxu0 0.0
        %1719 = vmatpush.xpose.msra.mxu0 0.0
        %1720 = vmatpush.xpose.msra.mxu0 0.0
        %1721 = vmatpush.xpose.msra.mxu0 0.0
        %1722 = vmatpush.xpose.msra.mxu0 0.0
        %1723 = vmatpush.xpose.msra.mxu0 0.0
        %1724 = vmatpush.xpose.msra.mxu0 0.0
        %1725 = vmatpush.xpose.msra.mxu0 0.0
        %1726 = vmatpush.xpose.msra.mxu0 0.0
        %1727 = vmatpush.xpose.msra.mxu0 0.0
        %1728 = vmatpush.xpose.msra.mxu0 %v1711
        %1729 = vmatmul.f32.gmra.mxu0 %v1709
        %v1730 = vpop.f32.mrf.mxu0
        %v1731 = vadd.f32 0.0, %v1730
        %1732 = vdwg.mxu0
        %1733 = vrot.lane.b32.xlu0 %v1099, 104
        %v1734 = vpop.permute.xlu0 %1733
        %1735 = vrot.lane.b32.xlu0 %v1135, 104
        %v1736 = vpop.permute.xlu0 %1735
        %v1737 = vsel %vm1147, %v1734, 0
        %v1739 = vsel %vm1147, %v1736, 0
        %1741 = vmatpush.xpose.msra.mxu0 0.0
        %1742 = vmatpush.xpose.msra.mxu0 0.0
        %1743 = vmatpush.xpose.msra.mxu0 0.0
        %1744 = vmatpush.xpose.msra.mxu0 0.0
        %1745 = vmatpush.xpose.msra.mxu0 0.0
        %1746 = vmatpush.xpose.msra.mxu0 0.0
        %1747 = vmatpush.xpose.msra.mxu0 0.0
        %1748 = vmatpush.xpose.msra.mxu0 0.0
        %1749 = vmatpush.xpose.msra.mxu0 0.0
        %1750 = vmatpush.xpose.msra.mxu0 0.0
        %1751 = vmatpush.xpose.msra.mxu0 0.0
        %1752 = vmatpush.xpose.msra.mxu0 0.0
        %1753 = vmatpush.xpose.msra.mxu0 0.0
        %1754 = vmatpush.xpose.msra.mxu0 0.0
        %1755 = vmatpush.xpose.msra.mxu0 0.0
        %1756 = vmatpush.xpose.msra.mxu0 %v1739
        %1757 = vmatmul.f32.gmra.mxu0 %v1737
        %v1758 = vpop.f32.mrf.mxu0
        %v1759 = vadd.f32 0.0, %v1758
        %1760 = vdwg.mxu0
        %v1761 = vsel %vm1147, %v1731, -inf
        %1762 = vmax.xlane.f32.xlu0 %v1761
        %v1763 = vpop.xlane.xlu0 %1762
        %v1764 = vsel %vm1147, %v1759, -inf
        %1765 = vmax.xlane.f32.xlu0 %v1764
        %v1766 = vpop.xlane.xlu0 %1765
        %v1767 = vsub.f32 %v1731, %v1763
        %v1768 = vsub.f32 %v1759, %v1766
        %v1769 = vmul.f32 %v1767, 1.442695
        %v1770 = vpow.pop %v1769
        %v1771 = vmul.f32 %v1768, 1.442695
        %v1772 = vpow.pop %v1771
        %v1773 = vsel %vm1147, %v1770, 0.0
        %1774 = vadd.xlane.f32.xlu0 %v1773
        %v1775 = vpop.xlane.xlu0 %1774
        %v1776 = vsel %vm1147, %v1772, 0.0
        %1777 = vadd.xlane.f32.xlu0 %v1776
        %v1778 = vpop.xlane.xlu0 %1777
        %v1779 = vrcp.pop %v1775
        %v1780 = vmul.f32 %v1775, %v1779
        %v1781 = vsub.f32 1.0, %v1780
        %v1782 = vmul.f32 %v1779, %v1781
        %v1783 = vadd.f32 %v1779, %v1782
        %vm1784 = vweird.f32 %v1775
        %vm1785 = vweird.f32 %v1779
        %vm1786 = vmor %vm1784, %vm1785
        %v1787 = vsel %vm1786, %v1779, %v1783
        %v1788 = vand.u32 2147483647, %v1775
        %vm1789 = vcmp.eq.f32.partialorder %v1788, 8.507059e+37
        %v1790 = vand.u32 %v1775, 2147483648
        %v1791 = vor.u32 1.1754944e-38, %v1790
        %v1792 = vsel %vm1789, %v1791, %v1787
        %v1793 = vmul.f32 %v1770, %v1792
        %v1794 = vrcp.pop %v1778
        %v1795 = vmul.f32 %v1778, %v1794
        %v1796 = vsub.f32 1.0, %v1795
        %v1797 = vmul.f32 %v1794, %v1796
        %v1798 = vadd.f32 %v1794, %v1797
        %vm1799 = vweird.f32 %v1778
        %vm1800 = vweird.f32 %v1794
        %vm1801 = vmor %vm1799, %vm1800
        %v1802 = vsel %vm1801, %v1794, %v1798
        %v1803 = vand.u32 2147483647, %v1778
        %vm1804 = vcmp.eq.f32.partialorder %v1803, 8.507059e+37
        %v1805 = vand.u32 %v1778, 2147483648
        %v1806 = vor.u32 1.1754944e-38, %v1805
        %v1807 = vsel %vm1804, %v1806, %v1802
        %v1808 = vmul.f32 %v1772, %v1807
        %1809 = vrot.lane.b32.xlu0 %v1132, 72
        %v1810 = vpop.permute.xlu0 %1809
        %v1813 = vsel %vm1147, %v1793, 0
        %1815 = vmatpush.msra.mxu0 0.0
        %1816 = vmatpush.msra.mxu0 0.0
        %1817 = vmatpush.msra.mxu0 0.0
        %1818 = vmatpush.msra.mxu0 0.0
        %1819 = vmatpush.msra.mxu0 0.0
        %1820 = vmatpush.msra.mxu0 0.0
        %1821 = vmatpush.msra.mxu0 0.0
        %1822 = vmatpush.msra.mxu0 0.0
        %1823 = vmatpush.msra.mxu0 0.0
        %1824 = vmatpush.msra.mxu0 0.0
        %1825 = vmatpush.msra.mxu0 0.0
        %1826 = vmatpush.msra.mxu0 0.0
        %1827 = vmatpush.msra.mxu0 0.0
        %1828 = vmatpush.msra.mxu0 0.0
        %1829 = vmatpush.msra.mxu0 0.0
        %1830 = vmatpush.msra.mxu0 %v1810
        %1831 = vmatmul.f32.gmra.mxu0 %v1813
        %v1832 = vpop.f32.mrf.mxu0
        %v1833 = vadd.f32 0.0, %v1832
        %1834 = vdwg.mxu0
        %1835 = vrot.lane.b32.xlu0 %v1135, 72
        %v1836 = vpop.permute.xlu0 %1835
        %v1839 = vsel %vm1147, %v1808, 0
        %1841 = vmatpush.msra.mxu0 0.0
        %1842 = vmatpush.msra.mxu0 0.0
        %1843 = vmatpush.msra.mxu0 0.0
        %1844 = vmatpush.msra.mxu0 0.0
        %1845 = vmatpush.msra.mxu0 0.0
        %1846 = vmatpush.msra.mxu0 0.0
        %1847 = vmatpush.msra.mxu0 0.0
        %1848 = vmatpush.msra.mxu0 0.0
        %1849 = vmatpush.msra.mxu0 0.0
        %1850 = vmatpush.msra.mxu0 0.0
        %1851 = vmatpush.msra.mxu0 0.0
        %1852 = vmatpush.msra.mxu0 0.0
        %1853 = vmatpush.msra.mxu0 0.0
        %1854 = vmatpush.msra.mxu0 0.0
        %1855 = vmatpush.msra.mxu0 0.0
        %1856 = vmatpush.msra.mxu0 %v1836
        %1857 = vmatmul.f32.gmra.mxu0 %v1839
        %v1858 = vpop.f32.mrf.mxu0
        %v1859 = vadd.f32 0.0, %v1858
        %1860 = vdwg.mxu0
        %v1862 = vsel %vm1147, %v1833, 0
        %v1865 = vsel %vm1147, %v1859, 0
        %1867 = vmatpush.msra.mxu0 0.0
        %1868 = vmatpush.msra.mxu0 0.0
        %1869 = vmatpush.msra.mxu0 0.0
        %1870 = vmatpush.msra.mxu0 0.0
        %1871 = vmatpush.msra.mxu0 0.0
        %1872 = vmatpush.msra.mxu0 0.0
        %1873 = vmatpush.msra.mxu0 0.0
        %1874 = vmatpush.msra.mxu0 0.0
        %1875 = vmatpush.msra.mxu0 0.0
        %1876 = vmatpush.msra.mxu0 0.0
        %1877 = vmatpush.msra.mxu0 0.0
        %1878 = vmatpush.msra.mxu0 0.0
        %1879 = vmatpush.msra.mxu0 0.0
        %1880 = vmatpush.msra.mxu0 0.0
        %1881 = vmatpush.msra.mxu0 0.0
        %1882 = vmatpush.msra.mxu0 %v1140
        %1883 = vmatmul.f32.gmra.mxu0 %v1862
        %v1884 = vpop.f32.mrf.mxu0
        %v1885 = vadd.f32 0.0, %v1884
        %1886 = vmatmul.f32.gmra.mxu0 %v1865
        %v1887 = vpop.f32.mrf.mxu0
        %v1888 = vadd.f32 0.0, %v1887
        %1889 = vdwg.mxu0
        %v1890 = vadd.f32 %v1703, %v1885
        %v1891 = vadd.f32 %v1704, %v1888
        %1892 = vst.msk [vmem:[#allocation17] sm:$0xff] %vm941, %v1890
        %1893 = vst.msk [vmem:[#allocation17 + $0x8] sm:$0xff] %vm941, %v1891
        %p1894 = scmp.eq.s32.totalorder %s48, 3
        // Predicated region
        $region133: #{tpu_custom_call.1} parent=91 // pred_check
          %p1895 = pneg %p1894
        $region134: #{tpu_custom_call.1} parent=91 // pred_check_branch
          %1897 = sbr.rel (%p1895) target = $region136
        $region135: #{tpu_custom_call.1} parent=91 // pred_region
          %v1898 = vld [vmem:[%s12] sm:$0x1]
          %v1899 = vld [vmem:[%s13] sm:$0x1]
          %v1900 = vsel %vm941, %v1890, 0.0
          %1901 = vadd.xlane.f32.xlu0 %v1900
          %v1902 = vpop.xlane.xlu0 %1901
          %v1903 = vsel %vm941, %v1891, 0.0
          %1904 = vadd.xlane.f32.xlu0 %v1903
          %v1905 = vpop.xlane.xlu0 %1904
          %v1906 = vmul.f32 %v1902, %v954
          %v1907 = vmul.f32 %v1905, %v954
          %v1908 = vsub.f32 %v1890, %v1906
          %v1909 = vsub.f32 %v1891, %v1907
          %v1910 = vmul.f32 %v1908, %v1908
          %v1911 = vmul.f32 %v1909, %v1909
          %v1912 = vsel %vm941, %v1910, 0.0
          %1913 = vadd.xlane.f32.xlu0 %v1912
          %v1914 = vpop.xlane.xlu0 %1913
          %v1915 = vsel %vm941, %v1911, 0.0
          %1916 = vadd.xlane.f32.xlu0 %v1915
          %v1917 = vpop.xlane.xlu0 %1916
          %v1918 = vmul.f32 %v1914, %v954
          %v1919 = vmul.f32 %v1917, %v954
          %v1920 = vadd.f32 %v1918, 1e-05
          %v1921 = vadd.f32 %v1919, 1e-05
          %v1922 = vrsqrt.pop %v1920
          %v1923 = vmul.f32 %v1922, %v1920
          %v1924 = vmul.f32 %v1923, %v1922
          %v1925 = vmul.f32 0.5, %v1924
          %v1926 = vsub.f32 1.5, %v1925
          %v1927 = vmul.f32 %v1922, %v1926
          %vm1928 = vweird.f32 %v1920
          %vm1929 = vweird.f32 %v1922
          %vm1930 = vmor %vm1928, %vm1929
          %v1931 = vsel %vm1930, %v1922, %v1927
          %v1932 = vrsqrt.pop %v1921
          %v1933 = vmul.f32 %v1932, %v1921
          %v1934 = vmul.f32 %v1933, %v1932
          %v1935 = vmul.f32 0.5, %v1934
          %v1936 = vsub.f32 1.5, %v1935
          %v1937 = vmul.f32 %v1932, %v1936
          %vm1938 = vweird.f32 %v1921
          %vm1939 = vweird.f32 %v1932
          %vm1940 = vmor %vm1938, %vm1939
          %v1941 = vsel %vm1940, %v1932, %v1937
          %v1942 = vmul.f32 %v1908, %v1931
          %v1943 = vmul.f32 %v1909, %v1941
          %v1945 = vperm.slane %v1898, 0
          %v1947 = vmul.f32 %v1942, %v1945
          %v1948 = vmul.f32 %v1943, %v1945
          %v1950 = vperm.slane %v1899, 0
          %v1952 = vadd.f32 %v1947, %v1950
          %v1953 = vadd.f32 %v1948, %v1950
          %v1954 = vld [vmem:[%s14] sm:$0xff]
          %v1955 = vld [vmem:[%s14 + $0x8] sm:$0xff]
          %v1956 = vld [vmem:[%s14 + $0x10] sm:$0xff]
          %v1957 = vld [vmem:[%s14 + $0x18] sm:$0xff]
          %v1958 = vld [vmem:[%s15] sm:$0x1]
          %v1960 = vperm.slane %v1958, 0
          %v1963 = vsel %vm941, %v1952, 0
          %v1966 = vsel %vm941, %v1953, 0
          %1968 = vmatpush.msra.mxu0 0.0
          %1969 = vmatpush.msra.mxu0 0.0
          %1970 = vmatpush.msra.mxu0 0.0
          %1971 = vmatpush.msra.mxu0 0.0
          %1972 = vmatpush.msra.mxu0 0.0
          %1973 = vmatpush.msra.mxu0 0.0
          %1974 = vmatpush.msra.mxu0 0.0
          %1975 = vmatpush.msra.mxu0 0.0
          %1976 = vmatpush.msra.mxu0 0.0
          %1977 = vmatpush.msra.mxu0 0.0
          %1978 = vmatpush.msra.mxu0 0.0
          %1979 = vmatpush.msra.mxu0 0.0
          %1980 = vmatpush.msra.mxu0 %v1957
          %1981 = vmatpush.msra.mxu0 %v1956
          %1982 = vmatpush.msra.mxu0 %v1955
          %1983 = vmatpush.msra.mxu0 %v1954
          %1984 = vmatmul.f32.gmra.mxu0 %v1963
          %v1985 = vpop.f32.mrf.mxu0
          %v1986 = vadd.f32 %v1960, %v1985
          %1987 = vmatmul.f32.gmra.mxu0 %v1966
          %v1988 = vpop.f32.mrf.mxu0
          %v1989 = vadd.f32 %v1960, %v1988
          %1990 = vdwg.mxu0
          %v1991 = vmul.f32 %v1986, 0.5
          %v1992 = vmul.f32 %v1989, 0.5
          %v1993 = vmul.f32 %v1986, 0.70710677
          %v1994 = vmul.f32 %v1989, 0.70710677
          %v1995 = vmul.f32 %v1993, %v1993
          %v1996 = vmin.f32 16.0, %v1995
          %v1997 = vmul.f32 %v1996, 2.1237322e-06
          %v1998 = vadd.f32 %v1997, 0.00028619796
          %v1999 = vmul.f32 %v1996, %v1998
          %v2000 = vadd.f32 %v1999, 0.0036580483
          %v2001 = vmul.f32 %v1996, %v2000
          %v2002 = vadd.f32 %v2001, 0.05243302
          %v2003 = vmul.f32 %v1996, %v2002
          %v2004 = vadd.f32 %v2003, 0.18741608
          %v2005 = vmul.f32 %v1996, %v2004
          %v2006 = vadd.f32 %v2005, 1.1283791
          %v2007 = vmul.f32 %v1993, %v2006
          %v2008 = vmul.f32 %v1996, 3.8918573e-05
          %v2009 = vadd.f32 %v2008, 0.001143296
          %v2010 = vmul.f32 %v1996, %v2009
          %v2011 = vadd.f32 %v2010, 0.014752088
          %v2012 = vmul.f32 %v1996, %v2011
          %v2013 = vadd.f32 %v2012, 0.112945676
          %v2014 = vmul.f32 %v1996, %v2013
          %v2015 = vadd.f32 %v2014, 0.4994258
          %v2016 = vmul.f32 %v1996, %v2015
          %v2017 = vadd.f32 %v2016, 1.0
          %v2018 = vrcp.pop %v2017
          %v2019 = vmul.f32 %v2017, %v2018
          %v2020 = vsub.f32 1.0, %v2019
          %v2021 = vmul.f32 %v2018, %v2020
          %v2022 = vadd.f32 %v2018, %v2021
          %vm2023 = vweird.f32 %v2017
          %vm2024 = vweird.f32 %v2018
          %vm2025 = vmor %vm2023, %vm2024
          %v2026 = vsel %vm2025, %v2018, %v2022
          %v2027 = vand.u32 2147483647, %v2017
          %vm2028 = vcmp.eq.f32.partialorder %v2027, 8.507059e+37
          %v2029 = vand.u32 %v2017, 2147483648
          %v2030 = vor.u32 1.1754944e-38, %v2029
          %v2031 = vsel %vm2028, %v2030, %v2026
          %v2032 = vmul.f32 %v2007, %v2031
          %v2033 = vmin.f32 %v2032, 1.0
          %v2034 = vmax.f32 %v2033, -1.0
          %v2035 = vmul.f32 %v1994, %v1994
          %v2036 = vmin.f32 16.0, %v2035
          %v2037 = vmul.f32 %v2036, 2.1237322e-06
          %v2038 = vadd.f32 %v2037, 0.00028619796
          %v2039 = vmul.f32 %v2036, %v2038
          %v2040 = vadd.f32 %v2039, 0.0036580483
          %v2041 = vmul.f32 %v2036, %v2040
          %v2042 = vadd.f32 %v2041, 0.05243302
          %v2043 = vmul.f32 %v2036, %v2042
          %v2044 = vadd.f32 %v2043, 0.18741608
          %v2045 = vmul.f32 %v2036, %v2044
          %v2046 = vadd.f32 %v2045, 1.1283791
          %v2047 = vmul.f32 %v1994, %v2046
          %v2048 = vmul.f32 %v2036, 3.8918573e-05
          %v2049 = vadd.f32 %v2048, 0.001143296
          %v2050 = vmul.f32 %v2036, %v2049
          %v2051 = vadd.f32 %v2050, 0.014752088
          %v2052 = vmul.f32 %v2036, %v2051
          %v2053 = vadd.f32 %v2052, 0.112945676
          %v2054 = vmul.f32 %v2036, %v2053
          %v2055 = vadd.f32 %v2054, 0.4994258
          %v2056 = vmul.f32 %v2036, %v2055
          %v2057 = vadd.f32 %v2056, 1.0
          %v2058 = vrcp.pop %v2057
          %v2059 = vmul.f32 %v2057, %v2058
          %v2060 = vsub.f32 1.0, %v2059
          %v2061 = vmul.f32 %v2058, %v2060
          %v2062 = vadd.f32 %v2058, %v2061
          %vm2063 = vweird.f32 %v2057
          %vm2064 = vweird.f32 %v2058
          %vm2065 = vmor %vm2063, %vm2064
          %v2066 = vsel %vm2065, %v2058, %v2062
          %v2067 = vand.u32 2147483647, %v2057
          %vm2068 = vcmp.eq.f32.partialorder %v2067, 8.507059e+37
          %v2069 = vand.u32 %v2057, 2147483648
          %v2070 = vor.u32 1.1754944e-38, %v2069
          %v2071 = vsel %vm2068, %v2070, %v2066
          %v2072 = vmul.f32 %v2047, %v2071
          %v2073 = vmin.f32 %v2072, 1.0
          %v2074 = vmax.f32 %v2073, -1.0
          %v2075 = vadd.f32 %v2034, 1.0
          %v2076 = vadd.f32 %v2074, 1.0
          %v2077 = vmul.f32 %v1991, %v2075
          %v2078 = vmul.f32 %v1992, %v2076
          %v2079 = vld [vmem:[%s16] sm:$0xff]
          %v2080 = vld [vmem:[%s16 + $0x8] sm:$0xff]
          %v2081 = vld [vmem:[%s16 + $0x10] sm:$0xff]
          %v2082 = vld [vmem:[%s16 + $0x18] sm:$0xff]
          %v2083 = vld [vmem:[%s16 + $0x20] sm:$0xff]
          %v2084 = vld [vmem:[%s16 + $0x28] sm:$0xff]
          %v2085 = vld [vmem:[%s16 + $0x30] sm:$0xff]
          %v2086 = vld [vmem:[%s16 + $0x38] sm:$0xff]
          %v2087 = vld [vmem:[%s16 + $0x40] sm:$0xff]
          %v2088 = vld [vmem:[%s16 + $0x48] sm:$0xff]
          %v2089 = vld [vmem:[%s16 + $0x50] sm:$0xff]
          %v2090 = vld [vmem:[%s16 + $0x58] sm:$0xff]
          %v2091 = vld [vmem:[%s16 + $0x60] sm:$0xff]
          %v2092 = vld [vmem:[%s16 + $0x68] sm:$0xff]
          %v2093 = vld [vmem:[%s16 + $0x70] sm:$0xff]
          %v2094 = vld [vmem:[%s16 + $0x78] sm:$0xff]
          %2095 = vmatpush.msra.mxu0 %v2094
          %2096 = vmatpush.msra.mxu0 %v2093
          %2097 = vmatpush.msra.mxu0 %v2092
          %2098 = vmatpush.msra.mxu0 %v2091
          %2099 = vmatpush.msra.mxu0 %v2090
          %2100 = vmatpush.msra.mxu0 %v2089
          %2101 = vmatpush.msra.mxu0 %v2088
          %2102 = vmatpush.msra.mxu0 %v2087
          %2103 = vmatpush.msra.mxu0 %v2086
          %2104 = vmatpush.msra.mxu0 %v2085
          %2105 = vmatpush.msra.mxu0 %v2084
          %2106 = vmatpush.msra.mxu0 %v2083
          %2107 = vmatpush.msra.mxu0 %v2082
          %2108 = vmatpush.msra.mxu0 %v2081
          %2109 = vmatpush.msra.mxu0 %v2080
          %2110 = vmatpush.msra.mxu0 %v2079
          %2111 = vmatmul.f32.gmra.mxu0 %v2077
          %v2112 = vpop.f32.mrf.mxu0
          %v2113 = vadd.f32 0.0, %v2112
          %2114 = vmatmul.f32.gmra.mxu0 %v2078
          %v2115 = vpop.f32.mrf.mxu0
          %v2116 = vadd.f32 0.0, %v2115
          %2117 = vdwg.mxu0
          %v2118 = vadd.f32 %v1890, %v2113
          %v2119 = vadd.f32 %v1891, %v2116
          %v2120 = vld [vmem:[%s17] sm:$0x1]
          %v2122 = vperm.slane %v2120, 0
          %v2124 = vadd.f32 %v2118, %v2122
          %v2125 = vadd.f32 %v2119, %v2122
          %2126 = vst.msk [vmem:[#allocation17] sm:$0xff] %vm941, %v2124
          %2127 = vst.msk [vmem:[#allocation17 + $0x8] sm:$0xff] %vm941, %v2125
        $region136: #{tpu_custom_call.1} parent=91 // pred_fallthru
          _
        // Predicated region
        $region137: #{tpu_custom_call.1} parent=91 // pred_check
          %p2128 = pneg %p513
        $region138: #{tpu_custom_call.1} parent=91 // pred_check_branch
          %2130 = sbr.rel (%p2128) target = $region140
        $region139: #{tpu_custom_call.1} parent=91 // pred_region
          %s2131 = smul.u32 2, %s47
          %2133 = vsyncadd [#allocation4], 0
          %s2134 = smul.addr %s2131, 8
          %s2135 = scalar_lea.hbm %s18, %s2134
          %s2136 = sshll.u32 [#allocation17], 4
          %s2137 = int_to_ptr.vmem [resolvable:$true] %s2136
          %s2138 = sshll.u32 %s2135, 4
          %s2139 = int_to_ptr.hbm [resolvable:$true] %s2138
          %2144 = dma.vmem_to_hbm [thread:$0]  %s2137, 256, %s2139, [#allocation4], 128, 128, 8
        $region140: #{tpu_custom_call.1} parent=91 // pred_fallthru
          _
        // Predicated region
        $region141: #{tpu_custom_call.1} parent=91 // pred_check
          %p2145 = pneg %p513
        $region142: #{tpu_custom_call.1} parent=91 // pred_check_branch
          %2147 = sbr.rel (%p2145) target = $region144
        $region143: #{tpu_custom_call.1} parent=91 // pred_region
          %2149 = dma.done [#allocation4], 256
        $region144: #{tpu_custom_call.1} parent=91 // pred_fallthru
          _
      $region92: #{tpu_custom_call.1} parent=5 // pred_fallthru
        _
      %p2150 = scmp.le.s32.totalorder 2, %s38
      // Predicated region
      $region145: #{tpu_custom_call.1} parent=5 // pred_check
        %p2151 = pneg %p2150
      $region146: #{tpu_custom_call.1} parent=5 // pred_check_branch
        %2153 = sbr.rel (%p2151) target = $region148
      $region147: #{tpu_custom_call.1} parent=5 // pred_region
        %s2154 = ssub.s32 %s38, 2
      $region148: #{tpu_custom_call.1} parent=5 // pred_fallthru
        _
    $region6: #{tpu_custom_call.1} parent=1 // loop_footer
      %s42 = sadd.s32 1, %s38
    $region7: #{tpu_custom_call.1} parent=1 // loop_footer_branch
      %37 = sbr.rel target = $region3
    $region8: #{tpu_custom_call.1} parent=1 // loop_exit
      _
    %2155 = vsyncpa [#allocation3], 1
    %s2156 = scalar_lea.sflag [#allocation3], 1
    %2157 = vsyncpa %s2156, 1
    %2158 = vsyncpa [#allocation6], 1
    %s2159 = scalar_lea.sflag [#allocation6], 1
    %2160 = vsyncpa %s2159, 1
    %2161 = vsyncpa [#allocation9], 1
    %s2162 = scalar_lea.sflag [#allocation9], 1
    %2163 = vsyncpa %s2162, 1
    %2164 = vsyncpa [#allocation12], 1
    %s2165 = scalar_lea.sflag [#allocation12], 1
    %2166 = vsyncpa %s2165, 1
    %2167 = vsyncpa [#allocation15], 1
    %s2168 = scalar_lea.sflag [#allocation15], 1
    %2169 = vsyncpa %s2168, 1
    %2170 = vsyncpa [#allocation4], 1
    %s2171 = scalar_lea.sflag [#allocation4], 1
    %2172 = vsyncpa %s2171, 1

</llo_original>
